<compile_context>
chip_gen: v6e
topology: v6e:2x2x1
jax: 0.10.0
libtpu: 0.0.40
codegen_flags: <defaults>
</compile_context>

<pallas_src>
import functools

import jax
import jax.numpy as jnp
from jax.experimental import pallas as pl
from jax.experimental.pallas import tpu as pltpu


# ---------------------------------------------------------------------------
# Fused Pallas kernel: conv1(3,5,'same') + SiLU + conv2(3,5,'same') + SiLU.
# One grid step == one batch element; everything inside is lane-dense (128).
# ---------------------------------------------------------------------------
def _fused_up2_kernel(x1col_ref, w1_ref, b1_ref, w2_ref, b2_ref, o_ref,
                      *, KH, KW, H, W):
    # Static shapes (per batch element, leading batch dim squeezed by BlockSpec):
    #   x1col_ref: (HW, K1)    K1 = KH*KW*Cin1          conv1 im2col (wrapper)
    #   w1_ref   : (K1, CHP)   CHP = hidden padded->128 (lane-dense)
    #   b1_ref   : (1, CHP)
    #   w2_ref   : (K2P, COP)  K2P = KH*KW*CHP, COP = Cout padded->128
    #   b2_ref   : (1, COP)
    #   o_ref    : (HW, COP)   lane-dense output slab
    HW = H * W
    CHP = w1_ref.shape[1]
    ph, pw = (KH - 1) // 2, (KW - 1) // 2

    # ---- Conv1: one big im2col matmul + bias + SiLU (N = CHP, full lanes) ---
    a1 = jnp.dot(x1col_ref[...], w1_ref[...], preferred_element_type=jnp.float32)
    a1 = a1 + b1_ref[...]
    h = a1 * jax.nn.sigmoid(a1)                        # (HW, CHP), SiLU on EUP

    # ---- 'same' padding of h at VALUE level (no scratch-ref round trip) -----
    h3 = h.reshape(H, W, CHP)
    zw = jnp.zeros((H, pw, CHP), jnp.float32)
    hpw = jnp.concatenate([zw, h3, zw], axis=1)        # (H, W+2*pw, CHP)
    zh = jnp.zeros((ph, W + 2 * pw, CHP), jnp.float32)
    hp = jnp.concatenate([zh, hpw, zh], axis=0)        # (H+2*ph, W+2*pw, CHP)

    # ---- Conv2: value-level im2col + one matmul + bias + SiLU ---------------
    cols = [hp[kh:kh + H, kw:kw + W, :].reshape(HW, CHP)
            for kh in range(KH) for kw in range(KW)]
    col2 = jnp.concatenate(cols, axis=1)               # (HW, K2P), lane-dense

    a2 = jnp.dot(col2, w2_ref[...], preferred_element_type=jnp.float32)
    a2 = a2 + b2_ref[...]
    y = a2 * jax.nn.sigmoid(a2)                        # (HW, COP)
    o_ref[...] = y.astype(o_ref.dtype)


# ---------------------------------------------------------------------------
# Glue: width-only bilinear upsample (scale (1,4), align_corners=False) — matches
# torch.nn.Upsample(scale_factor=(1,4), mode='bilinear') semantics.
# ---------------------------------------------------------------------------
def upsample_width_bilinear_nhwc(x, scale=4):
    B, H, W, C = x.shape
    Wo = W * scale
    src = (jnp.arange(Wo, dtype=jnp.float32) + 0.5) / scale - 0.5
    src = jnp.clip(src, 0.0, float(W - 1))
    i0 = jnp.floor(src).astype(jnp.int32)
    i1 = jnp.minimum(i0 + 1, W - 1)
    frac = (src - i0.astype(jnp.float32))[None, None, :, None]
    left = x[:, :, i0, :]
    right = x[:, :, i1, :]
    return left * (1.0 - frac) + right * frac


def _round_up(x, m):
    return (x + m - 1) // m * m


# ---------------------------------------------------------------------------
# One-time weight prep (hoisted out of the per-call wrapper).
# ---------------------------------------------------------------------------
def prepare_params(params):
    KH, KW = 3, 5
    w1, b1 = params["w1"], params["b1"]                # (3,5,Cin1,CH), (CH,)
    w2, b2 = params["w2"], params["b2"]                # (3,5,CH,Cout), (Cout,)
    Cin1, CH = w1.shape[2], w1.shape[3]
    Cout = w2.shape[3]
    CHP = _round_up(CH, 128)                           # lane-dense hidden width
    COP = _round_up(Cout, 128)                         # lane-dense output width
    K1 = KH * KW * Cin1
    K2P = KH * KW * CHP

    w1p = jnp.pad(w1, ((0, 0), (0, 0), (0, 0), (0, CHP - CH))).reshape(K1, CHP)
    b1p = jnp.pad(b1, (0, CHP - CH)).reshape(1, CHP)
    # Pad the input-channel axis of w2 to CHP so its flattened row ordering
    # matches the in-kernel col2 column ordering ((kh,kw) blocks of CHP rows).
    w2p = jnp.pad(w2, ((0, 0), (0, 0), (0, CHP - CH),
                       (0, COP - Cout))).reshape(K2P, COP)
    b2p = jnp.pad(b2, (0, COP - Cout)).reshape(1, COP)
    return dict(w1p=w1p, b1p=b1p, w2p=w2p, b2p=b2p,
                Cout=Cout, CHP=CHP, COP=COP, KH=KH, KW=KW)


# ---------------------------------------------------------------------------
# Sebastian_Up2 forward (NCHW in/out to mirror the PyTorch module).
# ---------------------------------------------------------------------------
def sebastian_up2_forward(prep, x1_nchw, x2_nchw):
    KH, KW = prep["KH"], prep["KW"]
    w1p, b1p, w2p, b2p = prep["w1p"], prep["b1p"], prep["w2p"], prep["b2p"]
    Cout, CHP, COP = prep["Cout"], prep["CHP"], prep["COP"]

    # NCHW -> NHWC
    x1 = jnp.transpose(x1_nchw, (0, 2, 3, 1))
    x2 = jnp.transpose(x2_nchw, (0, 2, 3, 1))

    x1_up = upsample_width_bilinear_nhwc(x1, scale=4)
    x = jnp.concatenate([x1_up, x2], axis=-1)          # (B, H, W, Cin1)
    B, H, W, Cin1 = x.shape

    ph, pw = KH // 2, KW // 2
    K1 = KH * KW * Cin1
    K2P = KH * KW * CHP
    HW = H * W

    # conv1 im2col in the wrapper -> flat (B, HW, K1) operand for the kernel.
    xp = jnp.pad(x, ((0, 0), (ph, ph), (pw, pw), (0, 0)))
    cols = [xp[:, kh:kh + H, kw:kw + W, :]
            for kh in range(KH) for kw in range(KW)]
    x1col = jnp.concatenate(cols, axis=-1).reshape(B, HW, K1)

    kernel = functools.partial(_fused_up2_kernel, KH=KH, KW=KW, H=H, W=W)
    out = pl.pallas_call(
        kernel,
        out_shape=jax.ShapeDtypeStruct((B, HW, COP), x.dtype),
        grid=(B,),
        in_specs=[
            pl.BlockSpec((None, HW, K1), lambda b: (b, 0, 0)),
            pl.BlockSpec((K1, CHP), lambda b: (0, 0)),
            pl.BlockSpec((1, CHP), lambda b: (0, 0)),
            pl.BlockSpec((K2P, COP), lambda b: (0, 0)),
            pl.BlockSpec((1, COP), lambda b: (0, 0)),
        ],
        out_specs=pl.BlockSpec((None, HW, COP), lambda b: (b, 0, 0)),
        compiler_params=pltpu.CompilerParams(
            dimension_semantics=("parallel",)),
    )(x1col, w1p, b1p, w2p, b2p)

    # Drop the lane padding, restore NHWC, then NCHW.
    y = out[:, :, :Cout].reshape(B, H, W, Cout)
    return jnp.transpose(y, (0, 3, 1, 2))


def init_params(key, in_channels, out_channels):
    """Deterministic parameter init (Kaiming-uniform-like, as in nn.Conv2d)."""
    hidden = out_channels
    c_in1 = in_channels + out_channels
    k1, k2, k3, k4 = jax.random.split(key, 4)

    def conv_init(kw_key, kb_key, kh, kw, cin, cout):
        fan_in = cin * kh * kw
        bound = 1.0 / jnp.sqrt(fan_in)
        w = jax.random.uniform(kw_key, (kh, kw, cin, cout), jnp.float32,
                               -bound, bound)
        b = jax.random.uniform(kb_key, (cout,), jnp.float32, -bound, bound)
        return w, b

    w1, b1 = conv_init(k1, k2, 3, 5, c_in1, hidden)
    w2, b2 = conv_init(k3, k4, 3, 5, hidden, out_channels)
    return {"w1": w1, "b1": b1, "w2": w2, "b2": b2}


if __name__ == "__main__":
    key = jax.random.PRNGKey(0)
    kx1, kx2, kp = jax.random.split(key, 3)

    in_channels, out_channels = 4, 4
    B, H, W1 = 2, 8, 4                       # x1 width gets upsampled 4x -> 16
    W2 = W1 * 4

    x1 = jax.random.normal(kx1, (B, in_channels, H, W1), jnp.float32)   # NCHW
    x2 = jax.random.normal(kx2, (B, out_channels, H, W2), jnp.float32)  # NCHW
    params = init_params(kp, in_channels, out_channels)
    prep = prepare_params(params)            # weight flatten/pad hoisted (once)

    fwd = jax.jit(functools.partial(sebastian_up2_forward, prep))
    out = fwd(x1, x2)
    jax.block_until_ready(out)

    assert out.shape == (B, out_channels, H, W2), out.shape
    print("KERNEL_OK")
</pallas_src>

<mosaic_0001>
module attributes {stable_mosaic.version = 11 : i64} {
  func.func @_fused_up2_kernel(%arg0: i32, %arg1: memref<1x128x120xf32, #tpu.memory_space<vmem>>, %arg2: memref<120x128xf32, #tpu.memory_space<vmem>>, %arg3: memref<1x128xf32, #tpu.memory_space<vmem>>, %arg4: memref<1920x128xf32, #tpu.memory_space<vmem>>, %arg5: memref<1x128xf32, #tpu.memory_space<vmem>>, %arg6: memref<1x128x128xf32, #tpu.memory_space<vmem>>) attributes {dimension_semantics = [#tpu.dimension_semantics<parallel>], iteration_bounds = array<i64: 2>, scalar_prefetch = 0 : i64, scratch_operands = 0 : i64, tpu.core_type = #tpu.core_type<tc>, window_params = [{transform_indices = @transform_0, window_bounds = array<i64: 1, 128, 120>}, {pipeline_mode = #tpu.pipeline_mode<synchronous>, transform_indices = @transform_1, window_bounds = array<i64: 120, 128>}, {pipeline_mode = #tpu.pipeline_mode<synchronous>, transform_indices = @transform_2, window_bounds = array<i64: 1, 128>}, {pipeline_mode = #tpu.pipeline_mode<synchronous>, transform_indices = @transform_3, window_bounds = array<i64: 1920, 128>}, {pipeline_mode = #tpu.pipeline_mode<synchronous>, transform_indices = @transform_4, window_bounds = array<i64: 1, 128>}, {transform_indices = @transform_5, window_bounds = array<i64: 1, 128, 128>}]} {
    %c0 = arith.constant 0 : index
    %c0_0 = arith.constant 0 : index
    %c0_1 = arith.constant 0 : index
    %0 = vector.load %arg1[%c0, %c0_0, %c0_1] : memref<1x128x120xf32, #tpu.memory_space<vmem>>, vector<1x128x120xf32>
    %1 = vector.shape_cast %0 : vector<1x128x120xf32> to vector<128x120xf32>
    %c0_2 = arith.constant 0 : index
    %c0_3 = arith.constant 0 : index
    %2 = vector.load %arg2[%c0_2, %c0_3] : memref<120x128xf32, #tpu.memory_space<vmem>>, vector<120x128xf32>
    %cst = arith.constant dense<0.000000e+00> : vector<128x128xf32>
    %3 = tpu.matmul %1, %2, %cst {dimension_numbers = #tpu.dot_dimension_numbers<[1], [0], [0], [1], [0, 0, 1, 1], [], []>} : vector<128x120xf32>, vector<120x128xf32>, vector<128x128xf32> -> vector<128x128xf32>
    %c0_4 = arith.constant 0 : index
    %c0_5 = arith.constant 0 : index
    %4 = vector.load %arg3[%c0_4, %c0_5] : memref<1x128xf32, #tpu.memory_space<vmem>>, vector<1x128xf32>
    %5 = vector.broadcast %4 : vector<1x128xf32> to vector<128x128xf32>
    %6 = arith.addf %3, %5 : vector<128x128xf32>
    %7 = arith.negf %6 : vector<128x128xf32>
    %8 = math.exp %7 : vector<128x128xf32>
    %cst_6 = arith.constant 1.000000e+00 : f32
    %9 = vector.broadcast %cst_6 : f32 to vector<128x128xf32>
    %10 = arith.addf %9, %8 : vector<128x128xf32>
    %11 = arith.divf %9, %10 : vector<128x128xf32>
    %12 = arith.mulf %6, %11 : vector<128x128xf32>
    %13 = vector.shape_cast %12 : vector<128x128xf32> to vector<8x16x128xf32>
    %cst_7 = arith.constant 0.000000e+00 : f32
    %14 = vector.broadcast %cst_7 : f32 to vector<8x2x128xf32>
    %15 = tpu.concatenate %14, %13, %14 in 1 : vector<8x2x128xf32>, vector<8x16x128xf32>, vector<8x2x128xf32> -> vector<8x20x128xf32>
    %cst_8 = arith.constant 0.000000e+00 : f32
    %16 = vector.broadcast %cst_8 : f32 to vector<1x20x128xf32>
    %17 = tpu.concatenate %16, %15, %16 in 0 : vector<1x20x128xf32>, vector<8x20x128xf32>, vector<1x20x128xf32> -> vector<10x20x128xf32>
    %18 = vector.extract_strided_slice %17 {offsets = [0, 0, 0], sizes = [8, 16, 128], strides = [1, 1, 1]} : vector<10x20x128xf32> to vector<8x16x128xf32>
    %19 = vector.shape_cast %18 : vector<8x16x128xf32> to vector<128x128xf32>
    %20 = vector.extract_strided_slice %17 {offsets = [0, 1, 0], sizes = [8, 16, 128], strides = [1, 1, 1]} : vector<10x20x128xf32> to vector<8x16x128xf32>
    %21 = vector.shape_cast %20 : vector<8x16x128xf32> to vector<128x128xf32>
    %22 = vector.extract_strided_slice %17 {offsets = [0, 2, 0], sizes = [8, 16, 128], strides = [1, 1, 1]} : vector<10x20x128xf32> to vector<8x16x128xf32>
    %23 = vector.shape_cast %22 : vector<8x16x128xf32> to vector<128x128xf32>
    %24 = vector.extract_strided_slice %17 {offsets = [0, 3, 0], sizes = [8, 16, 128], strides = [1, 1, 1]} : vector<10x20x128xf32> to vector<8x16x128xf32>
    %25 = vector.shape_cast %24 : vector<8x16x128xf32> to vector<128x128xf32>
    %26 = vector.extract_strided_slice %17 {offsets = [0, 4, 0], sizes = [8, 16, 128], strides = [1, 1, 1]} : vector<10x20x128xf32> to vector<8x16x128xf32>
    %27 = vector.shape_cast %26 : vector<8x16x128xf32> to vector<128x128xf32>
    %28 = vector.extract_strided_slice %17 {offsets = [1, 0, 0], sizes = [8, 16, 128], strides = [1, 1, 1]} : vector<10x20x128xf32> to vector<8x16x128xf32>
    %29 = vector.shape_cast %28 : vector<8x16x128xf32> to vector<128x128xf32>
    %30 = vector.extract_strided_slice %17 {offsets = [1, 1, 0], sizes = [8, 16, 128], strides = [1, 1, 1]} : vector<10x20x128xf32> to vector<8x16x128xf32>
    %31 = vector.shape_cast %30 : vector<8x16x128xf32> to vector<128x128xf32>
    %32 = vector.extract_strided_slice %17 {offsets = [1, 2, 0], sizes = [8, 16, 128], strides = [1, 1, 1]} : vector<10x20x128xf32> to vector<8x16x128xf32>
    %33 = vector.shape_cast %32 : vector<8x16x128xf32> to vector<128x128xf32>
    %34 = vector.extract_strided_slice %17 {offsets = [1, 3, 0], sizes = [8, 16, 128], strides = [1, 1, 1]} : vector<10x20x128xf32> to vector<8x16x128xf32>
    %35 = vector.shape_cast %34 : vector<8x16x128xf32> to vector<128x128xf32>
    %36 = vector.extract_strided_slice %17 {offsets = [1, 4, 0], sizes = [8, 16, 128], strides = [1, 1, 1]} : vector<10x20x128xf32> to vector<8x16x128xf32>
    %37 = vector.shape_cast %36 : vector<8x16x128xf32> to vector<128x128xf32>
    %38 = vector.extract_strided_slice %17 {offsets = [2, 0, 0], sizes = [8, 16, 128], strides = [1, 1, 1]} : vector<10x20x128xf32> to vector<8x16x128xf32>
    %39 = vector.shape_cast %38 : vector<8x16x128xf32> to vector<128x128xf32>
    %40 = vector.extract_strided_slice %17 {offsets = [2, 1, 0], sizes = [8, 16, 128], strides = [1, 1, 1]} : vector<10x20x128xf32> to vector<8x16x128xf32>
    %41 = vector.shape_cast %40 : vector<8x16x128xf32> to vector<128x128xf32>
    %42 = vector.extract_strided_slice %17 {offsets = [2, 2, 0], sizes = [8, 16, 128], strides = [1, 1, 1]} : vector<10x20x128xf32> to vector<8x16x128xf32>
    %43 = vector.shape_cast %42 : vector<8x16x128xf32> to vector<128x128xf32>
    %44 = vector.extract_strided_slice %17 {offsets = [2, 3, 0], sizes = [8, 16, 128], strides = [1, 1, 1]} : vector<10x20x128xf32> to vector<8x16x128xf32>
    %45 = vector.shape_cast %44 : vector<8x16x128xf32> to vector<128x128xf32>
    %46 = vector.extract_strided_slice %17 {offsets = [2, 4, 0], sizes = [8, 16, 128], strides = [1, 1, 1]} : vector<10x20x128xf32> to vector<8x16x128xf32>
    %47 = vector.shape_cast %46 : vector<8x16x128xf32> to vector<128x128xf32>
    %48 = tpu.concatenate %19, %21, %23, %25, %27, %29, %31, %33, %35, %37, %39, %41, %43, %45, %47 in 1 : vector<128x128xf32>, vector<128x128xf32>, vector<128x128xf32>, vector<128x128xf32>, vector<128x128xf32>, vector<128x128xf32>, vector<128x128xf32>, vector<128x128xf32>, vector<128x128xf32>, vector<128x128xf32>, vector<128x128xf32>, vector<128x128xf32>, vector<128x128xf32>, vector<128x128xf32>, vector<128x128xf32> -> vector<128x1920xf32>
    %c0_9 = arith.constant 0 : index
    %c0_10 = arith.constant 0 : index
    %49 = vector.load %arg4[%c0_9, %c0_10] : memref<1920x128xf32, #tpu.memory_space<vmem>>, vector<1920x128xf32>
    %cst_11 = arith.constant dense<0.000000e+00> : vector<128x128xf32>
    %50 = tpu.matmul %48, %49, %cst_11 {dimension_numbers = #tpu.dot_dimension_numbers<[1], [0], [0], [1], [0, 0, 1, 1], [], []>} : vector<128x1920xf32>, vector<1920x128xf32>, vector<128x128xf32> -> vector<128x128xf32>
    %c0_12 = arith.constant 0 : index
    %c0_13 = arith.constant 0 : index
    %51 = vector.load %arg5[%c0_12, %c0_13] : memref<1x128xf32, #tpu.memory_space<vmem>>, vector<1x128xf32>
    %52 = vector.broadcast %51 : vector<1x128xf32> to vector<128x128xf32>
    %53 = arith.addf %50, %52 : vector<128x128xf32>
    %54 = arith.negf %53 : vector<128x128xf32>
    %55 = math.exp %54 : vector<128x128xf32>
    %cst_14 = arith.constant 1.000000e+00 : f32
    %56 = vector.broadcast %cst_14 : f32 to vector<128x128xf32>
    %57 = arith.addf %56, %55 : vector<128x128xf32>
    %58 = arith.divf %56, %57 : vector<128x128xf32>
    %59 = arith.mulf %53, %58 : vector<128x128xf32>
    %c0_15 = arith.constant 0 : index
    %c0_16 = arith.constant 0 : index
    %c0_17 = arith.constant 0 : index
    %60 = vector.load %arg6[%c0_15, %c0_16, %c0_17] : memref<1x128x128xf32, #tpu.memory_space<vmem>>, vector<1x128x128xf32>
    %61 = vector.shape_cast %60 : vector<1x128x128xf32> to vector<128x128xf32>
    %62 = vector.shape_cast %59 : vector<128x128xf32> to vector<1x128x128xf32>
    tpu.vector_store %arg6[%c0_15, %c0_16, %c0_17], %62 {strides = array<i32>} : memref<1x128x128xf32, #tpu.memory_space<vmem>>, vector<1x128x128xf32>,
    return
  }
  func.func @transform_0(%arg0: i32) -> (i32, i32, i32) {
    %c0_i32 = arith.constant 0 : i32
    %c0_i32_0 = arith.constant 0 : i32
    %c0_i32_1 = arith.constant 0 : i32
    return %arg0, %c0_i32, %c0_i32_0 : i32, i32, i32
  }
  func.func @transform_1(%arg0: i32) -> (i32, i32) {
    %c0_i32 = arith.constant 0 : i32
    %c0_i32_0 = arith.constant 0 : i32
    %c0_i32_1 = arith.constant 0 : i32
    return %c0_i32, %c0_i32_0 : i32, i32
  }
  func.func @transform_2(%arg0: i32) -> (i32, i32) {
    %c0_i32 = arith.constant 0 : i32
    %c0_i32_0 = arith.constant 0 : i32
    %c0_i32_1 = arith.constant 0 : i32
    return %c0_i32, %c0_i32_0 : i32, i32
  }
  func.func @transform_3(%arg0: i32) -> (i32, i32) {
    %c0_i32 = arith.constant 0 : i32
    %c0_i32_0 = arith.constant 0 : i32
    %c0_i32_1 = arith.constant 0 : i32
    return %c0_i32, %c0_i32_0 : i32, i32
  }
  func.func @transform_4(%arg0: i32) -> (i32, i32) {
    %c0_i32 = arith.constant 0 : i32
    %c0_i32_0 = arith.constant 0 : i32
    %c0_i32_1 = arith.constant 0 : i32
    return %c0_i32, %c0_i32_0 : i32, i32
  }
  func.func @transform_5(%arg0: i32) -> (i32, i32, i32) {
    %c0_i32 = arith.constant 0 : i32
    %c0_i32_0 = arith.constant 0 : i32
    %c0_i32_1 = arith.constant 0 : i32
    return %arg0, %c0_i32, %c0_i32_0 : i32, i32, i32
  }
}

</mosaic_0001>

<llo_original>
// kernel: sebastian_up2_forward.1
$region0: #{sebastian_up2_forward.1}
  #allocation0 [shape = 'u32[]', space=smem, size = 0x4, offset = 0x4, fixed_abs, tag = 'smem constant byte address 0x4 - core index']
  #allocation1 [shape = 'u32[144,128]{1,0:T(1,128)}', space=vmem, size = 0x12000, scoped, tag = 'internal scratch']
  %s0 = inlined_call_operand.vmem [shape: f32[2,128,120], index: 0, kind: input, shape index: {}]
  %s1 = inlined_call_operand.vmem [shape: f32[120,128], index: 1, kind: input, shape index: {}]
  %s2 = inlined_call_operand.vmem [shape: f32[1,128], index: 2, kind: input, shape index: {}]
  %s3 = inlined_call_operand.vmem [shape: f32[1920,128], index: 3, kind: input, shape index: {}]
  %s4 = inlined_call_operand.vmem [shape: f32[1,128], index: 4, kind: input, shape index: {}]
  %s5 = inlined_call_operand.vmem [shape: f32[2,128,128], index: 5, kind: output, shape index: {}]
  %s6 = sld [smem:[#allocation0]]
  $region53: #{sebastian_up2_forward.1} parent=0
    _
  %s8 = ssub.s32 1, %s6
  %s9 = scalar_select 0, %s8, %s6
  loop: start=0, step=1, limit=4
  $region2: #{sebastian_up2_forward.1} parent=0 // loop_pre_header
    _
  $region3: #{sebastian_up2_forward.1} parent=0 // loop_header
    %s11 = sphi 0, %s15
    %p12 = scmp.ge.s32.totalorder %s11, 4
    %s21 = sphi 0, %s23
    %s24 = sphi 0, %s21
    %s25 = sphi 0, %s24
    %s41 = sphi 0, %s25
    %s45 = sphi 0, %s45
    %s47 = sphi 0, %s45
    %s48 = sphi 0, %s47
    %s62 = sphi 0, %s48
    %s66 = sphi 0, %s66
    %s68 = sphi 0, %s66
    %s69 = sphi 0, %s68
    %s83 = sphi 0, %s69
    %s87 = sphi 0, %s87
    %s89 = sphi 0, %s87
    %s90 = sphi 0, %s89
    %s104 = sphi 0, %s90
    %s108 = sphi 0, %s108
    %s110 = sphi 0, %s108
    %s111 = sphi 0, %s110
    %s125 = sphi 0, %s111
    %s131 = sphi 0, %s133
    %s134 = sphi 0, %s131
    %s135 = sphi 0, %s134
    %s151 = sphi 0, %s135
  $region4: #{sebastian_up2_forward.1} parent=0 // loop_header_branch
    %14 = sbr.rel (%p12) target = $region8
  $region5: #{sebastian_up2_forward.1} parent=0 // loop_body
    %s16 = ssub.s32 %s11, 1
    %s17 = ssub.s32 %s11, 2
    %s18 = sadd.s32 %s11, 1
    %s19 = ssub.s32 %s11, %s18
    %p20 = scmp.eq.s32.totalorder %s19, 0
    %s22 = sadd.s32 %s21, 1
    %s23 = scalar_select %p20, %s21, %s22
    %p26 = pneg %p20
    %p27 = scmp.eq.s32.totalorder %s11, 1
    %p28 = por %p26, %p27
    %p29 = scmp.ne.s32.totalorder %s21, %s24
    %p30 = scmp.eq.s32.totalorder %s11, 0
    %p31 = por %p29, %p30
    %p32 = scmp.ne.s32.totalorder %s21, %s24
    %p33 = scmp.eq.s32.totalorder %s16, 1
    %p34 = por %p32, %p33
    %p35 = scmp.ne.s32.totalorder %s24, %s25
    %p36 = scmp.eq.s32.totalorder %s16, 0
    %p37 = por %p35, %p36
    %p38 = scmp.ne.s32.totalorder %s24, %s25
    %p39 = scmp.eq.s32.totalorder %s17, 1
    %p40 = por %p38, %p39
    %p42 = scmp.ne.s32.totalorder %s25, %s41
    %p43 = scmp.eq.s32.totalorder %s17, 0
    %p44 = por %p42, %p43
    %s46 = sadd.s32 %s45, 1
    %p49 = scmp.eq.s32.totalorder %s11, 1
    %p50 = scmp.ne.s32.totalorder %s45, %s47
    %p51 = scmp.eq.s32.totalorder %s11, 0
    %p52 = por %p50, %p51
    %p53 = scmp.ne.s32.totalorder %s45, %s47
    %p54 = scmp.eq.s32.totalorder %s16, 1
    %p55 = por %p53, %p54
    %p56 = scmp.ne.s32.totalorder %s47, %s48
    %p57 = scmp.eq.s32.totalorder %s16, 0
    %p58 = por %p56, %p57
    %p59 = scmp.ne.s32.totalorder %s47, %s48
    %p60 = scmp.eq.s32.totalorder %s17, 1
    %p61 = por %p59, %p60
    %p63 = scmp.ne.s32.totalorder %s48, %s62
    %p64 = scmp.eq.s32.totalorder %s17, 0
    %p65 = por %p63, %p64
    %s67 = sadd.s32 %s66, 1
    %p70 = scmp.eq.s32.totalorder %s11, 1
    %p71 = scmp.ne.s32.totalorder %s66, %s68
    %p72 = scmp.eq.s32.totalorder %s11, 0
    %p73 = por %p71, %p72
    %p74 = scmp.ne.s32.totalorder %s66, %s68
    %p75 = scmp.eq.s32.totalorder %s16, 1
    %p76 = por %p74, %p75
    %p77 = scmp.ne.s32.totalorder %s68, %s69
    %p78 = scmp.eq.s32.totalorder %s16, 0
    %p79 = por %p77, %p78
    %p80 = scmp.ne.s32.totalorder %s68, %s69
    %p81 = scmp.eq.s32.totalorder %s17, 1
    %p82 = por %p80, %p81
    %p84 = scmp.ne.s32.totalorder %s69, %s83
    %p85 = scmp.eq.s32.totalorder %s17, 0
    %p86 = por %p84, %p85
    %s88 = sadd.s32 %s87, 1
    %p91 = scmp.eq.s32.totalorder %s11, 1
    %p92 = scmp.ne.s32.totalorder %s87, %s89
    %p93 = scmp.eq.s32.totalorder %s11, 0
    %p94 = por %p92, %p93
    %p95 = scmp.ne.s32.totalorder %s87, %s89
    %p96 = scmp.eq.s32.totalorder %s16, 1
    %p97 = por %p95, %p96
    %p98 = scmp.ne.s32.totalorder %s89, %s90
    %p99 = scmp.eq.s32.totalorder %s16, 0
    %p100 = por %p98, %p99
    %p101 = scmp.ne.s32.totalorder %s89, %s90
    %p102 = scmp.eq.s32.totalorder %s17, 1
    %p103 = por %p101, %p102
    %p105 = scmp.ne.s32.totalorder %s90, %s104
    %p106 = scmp.eq.s32.totalorder %s17, 0
    %p107 = por %p105, %p106
    %s109 = sadd.s32 %s108, 1
    %p112 = scmp.eq.s32.totalorder %s11, 1
    %p113 = scmp.ne.s32.totalorder %s108, %s110
    %p114 = scmp.eq.s32.totalorder %s11, 0
    %p115 = por %p113, %p114
    %p116 = scmp.ne.s32.totalorder %s108, %s110
    %p117 = scmp.eq.s32.totalorder %s16, 1
    %p118 = por %p116, %p117
    %p119 = scmp.ne.s32.totalorder %s110, %s111
    %p120 = scmp.eq.s32.totalorder %s16, 0
    %p121 = por %p119, %p120
    %p122 = scmp.ne.s32.totalorder %s110, %s111
    %p123 = scmp.eq.s32.totalorder %s17, 1
    %p124 = por %p122, %p123
    %p126 = scmp.ne.s32.totalorder %s111, %s125
    %p127 = scmp.eq.s32.totalorder %s17, 0
    %p128 = por %p126, %p127
    %s129 = ssub.s32 %s11, %s18
    %p130 = scmp.eq.s32.totalorder %s129, 0
    %s132 = sadd.s32 %s131, 1
    %s133 = scalar_select %p130, %s131, %s132
    %p136 = pneg %p130
    %p137 = scmp.eq.s32.totalorder %s11, 1
    %p138 = por %p136, %p137
    %p139 = scmp.ne.s32.totalorder %s131, %s134
    %p140 = scmp.eq.s32.totalorder %s11, 0
    %p141 = por %p139, %p140
    %p142 = scmp.ne.s32.totalorder %s131, %s134
    %p143 = scmp.eq.s32.totalorder %s16, 1
    %p144 = por %p142, %p143
    %p145 = scmp.ne.s32.totalorder %s134, %s135
    %p146 = scmp.eq.s32.totalorder %s16, 0
    %p147 = por %p145, %p146
    %p148 = scmp.ne.s32.totalorder %s134, %s135
    %p149 = scmp.eq.s32.totalorder %s17, 1
    %p150 = por %p148, %p149
    %p152 = scmp.ne.s32.totalorder %s135, %s151
    %p153 = scmp.eq.s32.totalorder %s17, 0
    %p154 = por %p152, %p153
    %p155 = scmp.le.s32.totalorder 1, %s11
    %p156 = scmp.lt.s32.totalorder %s11, 3
    %p157 = pnand %p155, %p156
    %p158 = pneg %p157
    // Predicated region
    $region9: #{sebastian_up2_forward.1} parent=5 // pred_check
      _
    $region10: #{sebastian_up2_forward.1} parent=5 // pred_check_branch
      %160 = sbr.rel (%p157) target = $region12
    $region11: #{sebastian_up2_forward.1} parent=5 // pred_region
      %s161 = ssub.s32 %s11, 1
      // Predicated region
      $region13: #{sebastian_up2_forward.1} parent=11 // pred_check
        %p162 = pneg %p58
      $region14: #{sebastian_up2_forward.1} parent=11 // pred_check_branch
        %164 = sbr.rel (%p162) target = $region16
      $region15: #{sebastian_up2_forward.1} parent=11 // pred_region
        _
      $region16: #{sebastian_up2_forward.1} parent=11 // pred_fallthru
        _
      // Predicated region
      $region17: #{sebastian_up2_forward.1} parent=11 // pred_check
        %p165 = pneg %p79
      $region18: #{sebastian_up2_forward.1} parent=11 // pred_check_branch
        %167 = sbr.rel (%p165) target = $region20
      $region19: #{sebastian_up2_forward.1} parent=11 // pred_region
        _
      $region20: #{sebastian_up2_forward.1} parent=11 // pred_fallthru
        _
      // Predicated region
      $region21: #{sebastian_up2_forward.1} parent=11 // pred_check
        %p168 = pneg %p100
      $region22: #{sebastian_up2_forward.1} parent=11 // pred_check_branch
        %170 = sbr.rel (%p168) target = $region24
      $region23: #{sebastian_up2_forward.1} parent=11 // pred_region
        _
      $region24: #{sebastian_up2_forward.1} parent=11 // pred_fallthru
        _
      // Predicated region
      $region25: #{sebastian_up2_forward.1} parent=11 // pred_check
        %p171 = pneg %p121
      $region26: #{sebastian_up2_forward.1} parent=11 // pred_check_branch
        %173 = sbr.rel (%p171) target = $region28
      $region27: #{sebastian_up2_forward.1} parent=11 // pred_region
        _
      $region28: #{sebastian_up2_forward.1} parent=11 // pred_fallthru
        _
    $region12: #{sebastian_up2_forward.1} parent=5 // pred_fallthru
      _
    %p174 = scmp.lt.s32.totalorder %s11, 2
    // Predicated region
    $region29: #{sebastian_up2_forward.1} parent=5 // pred_check
      %p175 = pneg %p174
    $region30: #{sebastian_up2_forward.1} parent=5 // pred_check_branch
      %177 = sbr.rel (%p175) target = $region32
    $region31: #{sebastian_up2_forward.1} parent=5 // pred_region
      // Predicated region
      $region33: #{sebastian_up2_forward.1} parent=31 // pred_check
        %p178 = pneg %p31
      $region34: #{sebastian_up2_forward.1} parent=31 // pred_check_branch
        %180 = sbr.rel (%p178) target = $region36
      $region35: #{sebastian_up2_forward.1} parent=31 // pred_region
        %p181 = scmp.lt.s32.totalorder %s11, 1
        %s182 = scalar_select %p181, %s11, 1
        %s183 = smul.addr %s182, 16
        %s184 = smul.addr %s183, 8
        %s185 = scalar_lea.vmem %s0, %s184
      $region36: #{sebastian_up2_forward.1} parent=31 // pred_fallthru
        _
    $region32: #{sebastian_up2_forward.1} parent=5 // pred_fallthru
      _
    %p186 = scmp.le.s32.totalorder 1, %s11
    %p187 = scmp.lt.s32.totalorder %s11, 3
    %p188 = pnand %p186, %p187
    %p189 = pneg %p188
    // Predicated region
    $region37: #{sebastian_up2_forward.1} parent=5 // pred_check
      _
    $region38: #{sebastian_up2_forward.1} parent=5 // pred_check_branch
      %191 = sbr.rel (%p188) target = $region40
    $region39: #{sebastian_up2_forward.1} parent=5 // pred_region
      %s192 = ssub.s32 %s11, 1
      %p193 = scmp.lt.s32.totalorder %s16, 1
      %s194 = scalar_select %p193, %s16, 1
      %s195 = smul.addr %s194, 16
      %s196 = smul.addr %s195, 8
      %s197 = scalar_lea.vmem %s0, %s196
      %p198 = pneg %p37
      %p199 = pneg %p34
      %p200 = pneg %p58
      %p201 = pneg %p55
      %p202 = pneg %p79
      %p203 = pneg %p76
      %p204 = pneg %p100
      %p205 = pneg %p97
      %p206 = pneg %p121
      %p207 = pneg %p118
      %p208 = pneg %p147
      %p209 = pneg %p144
      %p210 = scmp.lt.s32.totalorder %s16, 1
      %s211 = scalar_select %p210, %s16, 1
      %s212 = smul.addr %s211, 16
      %s213 = smul.addr %s212, 8
      %s214 = scalar_lea.vmem %s5, %s213
      %p215 = scmp.lt.s32.totalorder %s16, 1
      %s216 = scalar_select %p215, %s16, 1
      %s217 = smul.addr %s216, 16
      %s218 = smul.addr %s217, 8
      %s219 = scalar_lea.vmem %s0, %s218
      %p220 = scmp.lt.s32.totalorder %s16, 1
      %s221 = scalar_select %p220, %s16, 1
      %s222 = smul.addr %s221, 16
      %s223 = smul.addr %s222, 8
      %s224 = scalar_lea.vmem %s5, %s223
      %v225 = vld [vmem:[%s219] sm:$0xff]
      %v226 = vld [vmem:[%s219 + $0x8] sm:$0xff]
      %v227 = vld [vmem:[%s219 + $0x10] sm:$0xff]
      %v228 = vld [vmem:[%s219 + $0x18] sm:$0xff]
      %v229 = vld [vmem:[%s219 + $0x20] sm:$0xff]
      %v230 = vld [vmem:[%s219 + $0x28] sm:$0xff]
      %v231 = vld [vmem:[%s219 + $0x30] sm:$0xff]
      %v232 = vld [vmem:[%s219 + $0x38] sm:$0xff]
      %v233 = vld [vmem:[%s219 + $0x40] sm:$0xff]
      %v234 = vld [vmem:[%s219 + $0x48] sm:$0xff]
      %v235 = vld [vmem:[%s219 + $0x50] sm:$0xff]
      %v236 = vld [vmem:[%s219 + $0x58] sm:$0xff]
      %v237 = vld [vmem:[%s219 + $0x60] sm:$0xff]
      %v238 = vld [vmem:[%s219 + $0x68] sm:$0xff]
      %v239 = vld [vmem:[%s219 + $0x70] sm:$0xff]
      %v240 = vld [vmem:[%s219 + $0x78] sm:$0xff]
      %v241 = vld [vmem:[%s1] sm:$0xff]
      %v242 = vld [vmem:[%s1 + $0x8] sm:$0xff]
      %v243 = vld [vmem:[%s1 + $0x10] sm:$0xff]
      %v244 = vld [vmem:[%s1 + $0x18] sm:$0xff]
      %v245 = vld [vmem:[%s1 + $0x20] sm:$0xff]
      %v246 = vld [vmem:[%s1 + $0x28] sm:$0xff]
      %v247 = vld [vmem:[%s1 + $0x30] sm:$0xff]
      %v248 = vld [vmem:[%s1 + $0x38] sm:$0xff]
      %v249 = vld [vmem:[%s1 + $0x40] sm:$0xff]
      %v250 = vld [vmem:[%s1 + $0x48] sm:$0xff]
      %v251 = vld [vmem:[%s1 + $0x50] sm:$0xff]
      %v252 = vld [vmem:[%s1 + $0x58] sm:$0xff]
      %v253 = vld [vmem:[%s1 + $0x60] sm:$0xff]
      %v254 = vld [vmem:[%s1 + $0x68] sm:$0xff]
      %v255 = vld [vmem:[%s1 + $0x70] sm:$0xff]
      %v256 = vld [vmem:[%s2] sm:$0x1]
      %v258 = vlaneseq
      %v259 = vshrl.u32 %v258, 7
      %v260 = vsub.s32 0, %v259
      %v261 = vrot.slane %v256, %v260
      %vm263 = vcmask 982016
      %v265 = vsel %vm263, %v225, 0
      %v268 = vsel %vm263, %v226, 0
      %v271 = vsel %vm263, %v227, 0
      %v274 = vsel %vm263, %v228, 0
      %v277 = vsel %vm263, %v229, 0
      %v280 = vsel %vm263, %v230, 0
      %v283 = vsel %vm263, %v231, 0
      %v286 = vsel %vm263, %v232, 0
      %v289 = vsel %vm263, %v233, 0
      %v292 = vsel %vm263, %v234, 0
      %v295 = vsel %vm263, %v235, 0
      %v298 = vsel %vm263, %v236, 0
      %v301 = vsel %vm263, %v237, 0
      %v304 = vsel %vm263, %v238, 0
      %v307 = vsel %vm263, %v239, 0
      %v310 = vsel %vm263, %v240, 0
      %312 = vmatprep.subr.mxu0 0.0
      %313 = vmatpush1.msra.mxu0 0.0
      %314 = vmatprep.subr.mxu0 0.0
      %315 = vmatpush1.msra.mxu0 %v255
      %316 = vmatprep.subr.mxu0 0.0
      %317 = vmatpush1.msra.mxu0 %v254
      %318 = vmatprep.subr.mxu0 0.0
      %319 = vmatpush1.msra.mxu0 %v253
      %320 = vmatprep.subr.mxu0 0.0
      %321 = vmatpush1.msra.mxu0 %v252
      %322 = vmatprep.subr.mxu0 0.0
      %323 = vmatpush1.msra.mxu0 %v251
      %324 = vmatprep.subr.mxu0 0.0
      %325 = vmatpush1.msra.mxu0 %v250
      %326 = vmatprep.subr.mxu0 0.0
      %327 = vmatpush1.msra.mxu0 %v249
      %328 = vmatprep.subr.mxu0 0.0
      %329 = vmatpush1.msra.mxu0 %v248
      %330 = vmatprep.subr.mxu0 0.0
      %331 = vmatpush1.msra.mxu0 %v247
      %332 = vmatprep.subr.mxu0 0.0
      %333 = vmatpush1.msra.mxu0 %v246
      %334 = vmatprep.subr.mxu0 0.0
      %335 = vmatpush1.msra.mxu0 %v245
      %336 = vmatprep.subr.mxu0 0.0
      %337 = vmatpush1.msra.mxu0 %v244
      %338 = vmatprep.subr.mxu0 0.0
      %339 = vmatpush1.msra.mxu0 %v243
      %340 = vmatprep.subr.mxu0 0.0
      %341 = vmatpush1.msra.mxu0 %v242
      %342 = vmatprep.subr.mxu0 0.0
      %343 = vmatpush1.msra.mxu0 %v241
      %344 = vmatprep.subr.mxu0 0.0
      %345 = vmatpush2.msra.mxu0 0.0
      %346 = vmatprep.subr.mxu0 0.0
      %347 = vmatpush2.msra.mxu0 0.0
      %348 = vmatprep.subr.mxu0 0.0
      %349 = vmatpush2.msra.mxu0 0.0
      %350 = vmatprep.subr.mxu0 0.0
      %351 = vmatpush2.msra.mxu0 0.0
      %352 = vmatprep.subr.mxu0 0.0
      %353 = vmatpush2.msra.mxu0 0.0
      %354 = vmatprep.subr.mxu0 0.0
      %355 = vmatpush2.msra.mxu0 0.0
      %356 = vmatprep.subr.mxu0 0.0
      %357 = vmatpush2.msra.mxu0 0.0
      %358 = vmatprep.subr.mxu0 0.0
      %359 = vmatpush2.msra.mxu0 0.0
      %360 = vmatprep.subr.mxu0 0.0
      %361 = vmatpush2.msra.mxu0 0.0
      %362 = vmatprep.subr.mxu0 0.0
      %363 = vmatpush2.msra.mxu0 0.0
      %364 = vmatprep.subr.mxu0 0.0
      %365 = vmatpush2.msra.mxu0 0.0
      %366 = vmatprep.subr.mxu0 0.0
      %367 = vmatpush2.msra.mxu0 0.0
      %368 = vmatprep.subr.mxu0 0.0
      %369 = vmatpush2.msra.mxu0 0.0
      %370 = vmatprep.subr.mxu0 0.0
      %371 = vmatpush2.msra.mxu0 0.0
      %372 = vmatprep.subr.mxu0 0.0
      %373 = vmatpush2.msra.mxu0 0.0
      %374 = vmatprep.subr.mxu0 0.0
      %375 = vmatpush2.msra.mxu0 0.0
      %376 = vmatprep.mubr.f32.mxu0 0.0
      %377 = vmatmul.mubr.f32.gmra.mxu0 %v265
      %v378 = vpop.f32.mrf.mxu0
      %v379 = vadd.f32 %v261, %v378
      %v380 = vpop.f32.mrf.mxu0
      %381 = vmatprep.mubr.f32.mxu0 0.0
      %382 = vmatmul.mubr.f32.gmra.mxu0 %v268
      %v383 = vpop.f32.mrf.mxu0
      %v384 = vadd.f32 %v261, %v383
      %v385 = vpop.f32.mrf.mxu0
      %386 = vmatprep.mubr.f32.mxu0 0.0
      %387 = vmatmul.mubr.f32.gmra.mxu0 %v271
      %v388 = vpop.f32.mrf.mxu0
      %v389 = vadd.f32 %v261, %v388
      %v390 = vpop.f32.mrf.mxu0
      %391 = vmatprep.mubr.f32.mxu0 0.0
      %392 = vmatmul.mubr.f32.gmra.mxu0 %v274
      %v393 = vpop.f32.mrf.mxu0
      %v394 = vadd.f32 %v261, %v393
      %v395 = vpop.f32.mrf.mxu0
      %396 = vmatprep.mubr.f32.mxu0 0.0
      %397 = vmatmul.mubr.f32.gmra.mxu0 %v277
      %v398 = vpop.f32.mrf.mxu0
      %v399 = vadd.f32 %v261, %v398
      %v400 = vpop.f32.mrf.mxu0
      %401 = vmatprep.mubr.f32.mxu0 0.0
      %402 = vmatmul.mubr.f32.gmra.mxu0 %v280
      %v403 = vpop.f32.mrf.mxu0
      %v404 = vadd.f32 %v261, %v403
      %v405 = vpop.f32.mrf.mxu0
      %406 = vmatprep.mubr.f32.mxu0 0.0
      %407 = vmatmul.mubr.f32.gmra.mxu0 %v283
      %v408 = vpop.f32.mrf.mxu0
      %v409 = vadd.f32 %v261, %v408
      %v410 = vpop.f32.mrf.mxu0
      %411 = vmatprep.mubr.f32.mxu0 0.0
      %412 = vmatmul.mubr.f32.gmra.mxu0 %v286
      %v413 = vpop.f32.mrf.mxu0
      %v414 = vadd.f32 %v261, %v413
      %v415 = vpop.f32.mrf.mxu0
      %416 = vmatprep.mubr.f32.mxu0 0.0
      %417 = vmatmul.mubr.f32.gmra.mxu0 %v289
      %v418 = vpop.f32.mrf.mxu0
      %v419 = vadd.f32 %v261, %v418
      %v420 = vpop.f32.mrf.mxu0
      %421 = vmatprep.mubr.f32.mxu0 0.0
      %422 = vmatmul.mubr.f32.gmra.mxu0 %v292
      %v423 = vpop.f32.mrf.mxu0
      %v424 = vadd.f32 %v261, %v423
      %v425 = vpop.f32.mrf.mxu0
      %426 = vmatprep.mubr.f32.mxu0 0.0
      %427 = vmatmul.mubr.f32.gmra.mxu0 %v295
      %v428 = vpop.f32.mrf.mxu0
      %v429 = vadd.f32 %v261, %v428
      %v430 = vpop.f32.mrf.mxu0
      %431 = vmatprep.mubr.f32.mxu0 0.0
      %432 = vmatmul.mubr.f32.gmra.mxu0 %v298
      %v433 = vpop.f32.mrf.mxu0
      %v434 = vadd.f32 %v261, %v433
      %v435 = vpop.f32.mrf.mxu0
      %436 = vmatprep.mubr.f32.mxu0 0.0
      %437 = vmatmul.mubr.f32.gmra.mxu0 %v301
      %v438 = vpop.f32.mrf.mxu0
      %v439 = vadd.f32 %v261, %v438
      %v440 = vpop.f32.mrf.mxu0
      %441 = vmatprep.mubr.f32.mxu0 0.0
      %442 = vmatmul.mubr.f32.gmra.mxu0 %v304
      %v443 = vpop.f32.mrf.mxu0
      %v444 = vadd.f32 %v261, %v443
      %v445 = vpop.f32.mrf.mxu0
      %446 = vmatprep.mubr.f32.mxu0 0.0
      %447 = vmatmul.mubr.f32.gmra.mxu0 %v307
      %v448 = vpop.f32.mrf.mxu0
      %v449 = vadd.f32 %v261, %v448
      %v450 = vpop.f32.mrf.mxu0
      %451 = vmatprep.mubr.f32.mxu0 0.0
      %452 = vmatmul.mubr.f32.gmra.mxu0 %v310
      %v453 = vpop.f32.mrf.mxu0
      %v454 = vadd.f32 %v261, %v453
      %v455 = vpop.f32.mrf.mxu0
      %456 = vdwg.mxu0
      %v457 = vxor.u32 %v379, 2147483648
      %v458 = vxor.u32 %v384, 2147483648
      %v459 = vxor.u32 %v389, 2147483648
      %v460 = vxor.u32 %v394, 2147483648
      %v461 = vxor.u32 %v399, 2147483648
      %v462 = vxor.u32 %v404, 2147483648
      %v463 = vxor.u32 %v409, 2147483648
      %v464 = vxor.u32 %v414, 2147483648
      %v465 = vxor.u32 %v419, 2147483648
      %v466 = vxor.u32 %v424, 2147483648
      %v467 = vxor.u32 %v429, 2147483648
      %v468 = vxor.u32 %v434, 2147483648
      %v469 = vxor.u32 %v439, 2147483648
      %v470 = vxor.u32 %v444, 2147483648
      %v471 = vxor.u32 %v449, 2147483648
      %v472 = vxor.u32 %v454, 2147483648
      %v473 = vmul.f32 %v457, 1.442695
      %v474 = vpow.pop %v473
      %v475 = vmul.f32 %v458, 1.442695
      %v476 = vpow.pop %v475
      %v477 = vmul.f32 %v459, 1.442695
      %v478 = vpow.pop %v477
      %v479 = vmul.f32 %v460, 1.442695
      %v480 = vpow.pop %v479
      %v481 = vmul.f32 %v461, 1.442695
      %v482 = vpow.pop %v481
      %v483 = vmul.f32 %v462, 1.442695
      %v484 = vpow.pop %v483
      %v485 = vmul.f32 %v463, 1.442695
      %v486 = vpow.pop %v485
      %v487 = vmul.f32 %v464, 1.442695
      %v488 = vpow.pop %v487
      %v489 = vmul.f32 %v465, 1.442695
      %v490 = vpow.pop %v489
      %v491 = vmul.f32 %v466, 1.442695
      %v492 = vpow.pop %v491
      %v493 = vmul.f32 %v467, 1.442695
      %v494 = vpow.pop %v493
      %v495 = vmul.f32 %v468, 1.442695
      %v496 = vpow.pop %v495
      %v497 = vmul.f32 %v469, 1.442695
      %v498 = vpow.pop %v497
      %v499 = vmul.f32 %v470, 1.442695
      %v500 = vpow.pop %v499
      %v501 = vmul.f32 %v471, 1.442695
      %v502 = vpow.pop %v501
      %v503 = vmul.f32 %v472, 1.442695
      %v504 = vpow.pop %v503
      %v505 = vadd.f32 %v474, 1.0
      %v506 = vadd.f32 %v476, 1.0
      %v507 = vadd.f32 %v478, 1.0
      %v508 = vadd.f32 %v480, 1.0
      %v509 = vadd.f32 %v482, 1.0
      %v510 = vadd.f32 %v484, 1.0
      %v511 = vadd.f32 %v486, 1.0
      %v512 = vadd.f32 %v488, 1.0
      %v513 = vadd.f32 %v490, 1.0
      %v514 = vadd.f32 %v492, 1.0
      %v515 = vadd.f32 %v494, 1.0
      %v516 = vadd.f32 %v496, 1.0
      %v517 = vadd.f32 %v498, 1.0
      %v518 = vadd.f32 %v500, 1.0
      %v519 = vadd.f32 %v502, 1.0
      %v520 = vadd.f32 %v504, 1.0
      %v521 = vrcp.pop %v505
      %v522 = vmul.f32 1.0, %v521
      %v523 = vrcp.pop %v506
      %v524 = vmul.f32 1.0, %v523
      %v525 = vrcp.pop %v507
      %v526 = vmul.f32 1.0, %v525
      %v527 = vrcp.pop %v508
      %v528 = vmul.f32 1.0, %v527
      %v529 = vrcp.pop %v509
      %v530 = vmul.f32 1.0, %v529
      %v531 = vrcp.pop %v510
      %v532 = vmul.f32 1.0, %v531
      %v533 = vrcp.pop %v511
      %v534 = vmul.f32 1.0, %v533
      %v535 = vrcp.pop %v512
      %v536 = vmul.f32 1.0, %v535
      %v537 = vrcp.pop %v513
      %v538 = vmul.f32 1.0, %v537
      %v539 = vrcp.pop %v514
      %v540 = vmul.f32 1.0, %v539
      %v541 = vrcp.pop %v515
      %v542 = vmul.f32 1.0, %v541
      %v543 = vrcp.pop %v516
      %v544 = vmul.f32 1.0, %v543
      %v545 = vrcp.pop %v517
      %v546 = vmul.f32 1.0, %v545
      %v547 = vrcp.pop %v518
      %v548 = vmul.f32 1.0, %v547
      %v549 = vrcp.pop %v519
      %v550 = vmul.f32 1.0, %v549
      %v551 = vrcp.pop %v520
      %v552 = vmul.f32 1.0, %v551
      %v553 = vmul.f32 %v379, %v522
      %v554 = vmul.f32 %v384, %v524
      %v555 = vmul.f32 %v389, %v526
      %v556 = vmul.f32 %v394, %v528
      %v557 = vmul.f32 %v399, %v530
      %v558 = vmul.f32 %v404, %v532
      %v559 = vmul.f32 %v409, %v534
      %v560 = vmul.f32 %v414, %v536
      %v561 = vmul.f32 %v419, %v538
      %v562 = vmul.f32 %v424, %v540
      %v563 = vmul.f32 %v429, %v542
      %v564 = vmul.f32 %v434, %v544
      %v565 = vmul.f32 %v439, %v546
      %v566 = vmul.f32 %v444, %v548
      %v567 = vmul.f32 %v449, %v550
      %v568 = vmul.f32 %v454, %v552
      %vm585 = vcmask 1041408
      %v586 = vrot.slane %v553, 6
      %v587 = vrot.slane %v554, 6
      %v588 = vsel %vm585, %v586, %v587
      %v589 = vrot.slane %v555, 6
      %v590 = vrot.slane %v556, 6
      %v591 = vsel %vm585, %v589, %v590
      %v592 = vrot.slane %v557, 6
      %v593 = vrot.slane %v558, 6
      %v594 = vsel %vm585, %v592, %v593
      %v595 = vrot.slane %v559, 6
      %v596 = vrot.slane %v560, 6
      %v597 = vsel %vm585, %v595, %v596
      %v598 = vrot.slane %v561, 6
      %v599 = vrot.slane %v562, 6
      %v600 = vsel %vm585, %v598, %v599
      %v601 = vrot.slane %v563, 6
      %v602 = vrot.slane %v564, 6
      %v603 = vsel %vm585, %v601, %v602
      %v604 = vrot.slane %v565, 6
      %v605 = vrot.slane %v566, 6
      %v606 = vsel %vm585, %v604, %v605
      %v607 = vrot.slane %v567, 6
      %v608 = vrot.slane %v568, 6
      %v609 = vsel %vm585, %v607, %v608
      %v634 = vsel %vm585, 0.0, %v586
      %v635 = vsel %vm585, 0.0, %v589
      %v636 = vsel %vm585, 0.0, %v592
      %v637 = vsel %vm585, 0.0, %v595
      %v638 = vsel %vm585, 0.0, %v598
      %v639 = vsel %vm585, 0.0, %v601
      %v640 = vsel %vm585, 0.0, %v604
      %v641 = vsel %vm585, 0.0, %v607
      %v642 = vsel %vm585, %v587, 0.0
      %v643 = vsel %vm585, %v590, 0.0
      %v644 = vsel %vm585, %v593, 0.0
      %v645 = vsel %vm585, %v596, 0.0
      %v646 = vsel %vm585, %v599, 0.0
      %v647 = vsel %vm585, %v602, 0.0
      %v648 = vsel %vm585, %v605, 0.0
      %v649 = vsel %vm585, %v608, 0.0
      %vm665 = vcmask 1046528
      %v666 = vrot.slane 0.0, 1
      %v667 = vsel %vm665, %v666, %v666
      %v668 = vrot.slane %v634, 1
      %v669 = vrot.slane %v588, 1
      %v670 = vsel %vm665, %v668, %v669
      %v671 = vrot.slane %v642, 1
      %v672 = vsel %vm665, %v669, %v671
      %v673 = vrot.slane %v635, 1
      %v674 = vrot.slane %v591, 1
      %v675 = vsel %vm665, %v673, %v674
      %v676 = vrot.slane %v643, 1
      %v677 = vsel %vm665, %v674, %v676
      %v678 = vrot.slane %v636, 1
      %v679 = vrot.slane %v594, 1
      %v680 = vsel %vm665, %v678, %v679
      %v681 = vrot.slane %v644, 1
      %v682 = vsel %vm665, %v679, %v681
      %v683 = vrot.slane %v637, 1
      %v684 = vrot.slane %v597, 1
      %v685 = vsel %vm665, %v683, %v684
      %v686 = vrot.slane %v645, 1
      %v687 = vsel %vm665, %v684, %v686
      %v688 = vrot.slane %v638, 1
      %v689 = vrot.slane %v600, 1
      %v690 = vsel %vm665, %v688, %v689
      %v691 = vrot.slane %v646, 1
      %v692 = vsel %vm665, %v689, %v691
      %v693 = vrot.slane %v639, 1
      %v694 = vrot.slane %v603, 1
      %v695 = vsel %vm665, %v693, %v694
      %v696 = vrot.slane %v647, 1
      %v697 = vsel %vm665, %v694, %v696
      %v698 = vrot.slane %v640, 1
      %v699 = vrot.slane %v606, 1
      %v700 = vsel %vm665, %v698, %v699
      %v701 = vrot.slane %v648, 1
      %v702 = vsel %vm665, %v699, %v701
      %vm718 = vcmask 1045504
      %v719 = vrot.slane 0.0, 2
      %v720 = vsel %vm718, %v719, %v719
      %v721 = vrot.slane %v634, 2
      %v722 = vrot.slane %v588, 2
      %v723 = vsel %vm718, %v721, %v722
      %v724 = vrot.slane %v642, 2
      %v725 = vsel %vm718, %v722, %v724
      %v726 = vrot.slane %v635, 2
      %v727 = vrot.slane %v591, 2
      %v728 = vsel %vm718, %v726, %v727
      %v729 = vrot.slane %v643, 2
      %v730 = vsel %vm718, %v727, %v729
      %v731 = vrot.slane %v636, 2
      %v732 = vrot.slane %v594, 2
      %v733 = vsel %vm718, %v731, %v732
      %v734 = vrot.slane %v644, 2
      %v735 = vsel %vm718, %v732, %v734
      %v736 = vrot.slane %v637, 2
      %v737 = vrot.slane %v597, 2
      %v738 = vsel %vm718, %v736, %v737
      %v739 = vrot.slane %v645, 2
      %v740 = vsel %vm718, %v737, %v739
      %v741 = vrot.slane %v638, 2
      %v742 = vrot.slane %v600, 2
      %v743 = vsel %vm718, %v741, %v742
      %v744 = vrot.slane %v646, 2
      %v745 = vsel %vm718, %v742, %v744
      %v746 = vrot.slane %v639, 2
      %v747 = vrot.slane %v603, 2
      %v748 = vsel %vm718, %v746, %v747
      %v749 = vrot.slane %v647, 2
      %v750 = vsel %vm718, %v747, %v749
      %v751 = vrot.slane %v640, 2
      %v752 = vrot.slane %v606, 2
      %v753 = vsel %vm718, %v751, %v752
      %v754 = vrot.slane %v648, 2
      %v755 = vsel %vm718, %v752, %v754
      %vm771 = vcmask 1044480
      %v772 = vrot.slane 0.0, 3
      %v773 = vsel %vm771, %v772, %v772
      %v774 = vrot.slane %v634, 3
      %v775 = vrot.slane %v588, 3
      %v776 = vsel %vm771, %v774, %v775
      %v777 = vrot.slane %v642, 3
      %v778 = vsel %vm771, %v775, %v777
      %v779 = vrot.slane %v635, 3
      %v780 = vrot.slane %v591, 3
      %v781 = vsel %vm771, %v779, %v780
      %v782 = vrot.slane %v643, 3
      %v783 = vsel %vm771, %v780, %v782
      %v784 = vrot.slane %v636, 3
      %v785 = vrot.slane %v594, 3
      %v786 = vsel %vm771, %v784, %v785
      %v787 = vrot.slane %v644, 3
      %v788 = vsel %vm771, %v785, %v787
      %v789 = vrot.slane %v637, 3
      %v790 = vrot.slane %v597, 3
      %v791 = vsel %vm771, %v789, %v790
      %v792 = vrot.slane %v645, 3
      %v793 = vsel %vm771, %v790, %v792
      %v794 = vrot.slane %v638, 3
      %v795 = vrot.slane %v600, 3
      %v796 = vsel %vm771, %v794, %v795
      %v797 = vrot.slane %v646, 3
      %v798 = vsel %vm771, %v795, %v797
      %v799 = vrot.slane %v639, 3
      %v800 = vrot.slane %v603, 3
      %v801 = vsel %vm771, %v799, %v800
      %v802 = vrot.slane %v647, 3
      %v803 = vsel %vm771, %v800, %v802
      %v804 = vrot.slane %v640, 3
      %v805 = vrot.slane %v606, 3
      %v806 = vsel %vm771, %v804, %v805
      %v807 = vrot.slane %v648, 3
      %v808 = vsel %vm771, %v805, %v807
      %vm824 = vcmask 1043456
      %v825 = vrot.slane 0.0, 4
      %v826 = vsel %vm824, %v825, %v825
      %v827 = vrot.slane %v634, 4
      %v828 = vrot.slane %v588, 4
      %v829 = vsel %vm824, %v827, %v828
      %v830 = vrot.slane %v642, 4
      %v831 = vsel %vm824, %v828, %v830
      %v832 = vrot.slane %v635, 4
      %v833 = vrot.slane %v591, 4
      %v834 = vsel %vm824, %v832, %v833
      %v835 = vrot.slane %v643, 4
      %v836 = vsel %vm824, %v833, %v835
      %v837 = vrot.slane %v636, 4
      %v838 = vrot.slane %v594, 4
      %v839 = vsel %vm824, %v837, %v838
      %v840 = vrot.slane %v644, 4
      %v841 = vsel %vm824, %v838, %v840
      %v842 = vrot.slane %v637, 4
      %v843 = vrot.slane %v597, 4
      %v844 = vsel %vm824, %v842, %v843
      %v845 = vrot.slane %v645, 4
      %v846 = vsel %vm824, %v843, %v845
      %v847 = vrot.slane %v638, 4
      %v848 = vrot.slane %v600, 4
      %v849 = vsel %vm824, %v847, %v848
      %v850 = vrot.slane %v646, 4
      %v851 = vsel %vm824, %v848, %v850
      %v852 = vrot.slane %v639, 4
      %v853 = vrot.slane %v603, 4
      %v854 = vsel %vm824, %v852, %v853
      %v855 = vrot.slane %v647, 4
      %v856 = vsel %vm824, %v853, %v855
      %v857 = vrot.slane %v640, 4
      %v858 = vrot.slane %v606, 4
      %v859 = vsel %vm824, %v857, %v858
      %v860 = vrot.slane %v648, 4
      %v861 = vsel %vm824, %v858, %v860
      %v879 = vrot.slane %v641, 1
      %v880 = vrot.slane %v609, 1
      %v881 = vsel %vm665, %v879, %v880
      %v882 = vrot.slane %v649, 1
      %v883 = vsel %vm665, %v880, %v882
      %v886 = vrot.slane %v641, 2
      %v887 = vrot.slane %v609, 2
      %v888 = vsel %vm718, %v886, %v887
      %v889 = vrot.slane %v649, 2
      %v890 = vsel %vm718, %v887, %v889
      %v893 = vrot.slane %v641, 3
      %v894 = vrot.slane %v609, 3
      %v895 = vsel %vm771, %v893, %v894
      %v896 = vrot.slane %v649, 3
      %v897 = vsel %vm771, %v894, %v896
      %v900 = vrot.slane %v641, 4
      %v901 = vrot.slane %v609, 4
      %v902 = vsel %vm824, %v900, %v901
      %v903 = vrot.slane %v649, 4
      %v904 = vsel %vm824, %v901, %v903
      %v907 = vld [vmem:[%s3] sm:$0xff]
      %v908 = vld [vmem:[%s3 + $0x8] sm:$0xff]
      %v909 = vld [vmem:[%s3 + $0x10] sm:$0xff]
      %v910 = vld [vmem:[%s3 + $0x18] sm:$0xff]
      %v911 = vld [vmem:[%s3 + $0x20] sm:$0xff]
      %v912 = vld [vmem:[%s3 + $0x28] sm:$0xff]
      %v913 = vld [vmem:[%s3 + $0x30] sm:$0xff]
      %v914 = vld [vmem:[%s3 + $0x38] sm:$0xff]
      %v915 = vld [vmem:[%s3 + $0x40] sm:$0xff]
      %v916 = vld [vmem:[%s3 + $0x48] sm:$0xff]
      %v917 = vld [vmem:[%s3 + $0x50] sm:$0xff]
      %v918 = vld [vmem:[%s3 + $0x58] sm:$0xff]
      %v919 = vld [vmem:[%s3 + $0x60] sm:$0xff]
      %v920 = vld [vmem:[%s3 + $0x68] sm:$0xff]
      %v921 = vld [vmem:[%s3 + $0x70] sm:$0xff]
      %v922 = vld [vmem:[%s3 + $0x78] sm:$0xff]
      %v923 = vld [vmem:[%s3 + $0x80] sm:$0xff]
      %v924 = vld [vmem:[%s3 + $0x88] sm:$0xff]
      %v925 = vld [vmem:[%s3 + $0x90] sm:$0xff]
      %v926 = vld [vmem:[%s3 + $0x98] sm:$0xff]
      %v927 = vld [vmem:[%s3 + $0xa0] sm:$0xff]
      %v928 = vld [vmem:[%s3 + $0xa8] sm:$0xff]
      %v929 = vld [vmem:[%s3 + $0xb0] sm:$0xff]
      %v930 = vld [vmem:[%s3 + $0xb8] sm:$0xff]
      %v931 = vld [vmem:[%s3 + $0xc0] sm:$0xff]
      %v932 = vld [vmem:[%s3 + $0xc8] sm:$0xff]
      %v933 = vld [vmem:[%s3 + $0xd0] sm:$0xff]
      %v934 = vld [vmem:[%s3 + $0xd8] sm:$0xff]
      %v935 = vld [vmem:[%s3 + $0xe0] sm:$0xff]
      %v936 = vld [vmem:[%s3 + $0xe8] sm:$0xff]
      %v937 = vld [vmem:[%s3 + $0xf0] sm:$0xff]
      %v938 = vld [vmem:[%s3 + $0xf8] sm:$0xff]
      %v939 = vld [vmem:[%s3 + $0x100] sm:$0xff]
      %v940 = vld [vmem:[%s3 + $0x108] sm:$0xff]
      %v941 = vld [vmem:[%s3 + $0x110] sm:$0xff]
      %v942 = vld [vmem:[%s3 + $0x118] sm:$0xff]
      %v943 = vld [vmem:[%s3 + $0x120] sm:$0xff]
      %v944 = vld [vmem:[%s3 + $0x128] sm:$0xff]
      %v945 = vld [vmem:[%s3 + $0x130] sm:$0xff]
      %v946 = vld [vmem:[%s3 + $0x138] sm:$0xff]
      %v947 = vld [vmem:[%s3 + $0x140] sm:$0xff]
      %v948 = vld [vmem:[%s3 + $0x148] sm:$0xff]
      %v949 = vld [vmem:[%s3 + $0x150] sm:$0xff]
      %v950 = vld [vmem:[%s3 + $0x158] sm:$0xff]
      %v951 = vld [vmem:[%s3 + $0x160] sm:$0xff]
      %v952 = vld [vmem:[%s3 + $0x168] sm:$0xff]
      %v953 = vld [vmem:[%s3 + $0x170] sm:$0xff]
      %v954 = vld [vmem:[%s3 + $0x178] sm:$0xff]
      %v955 = vld [vmem:[%s3 + $0x180] sm:$0xff]
      %v956 = vld [vmem:[%s3 + $0x188] sm:$0xff]
      %v957 = vld [vmem:[%s3 + $0x190] sm:$0xff]
      %v958 = vld [vmem:[%s3 + $0x198] sm:$0xff]
      %v959 = vld [vmem:[%s3 + $0x1a0] sm:$0xff]
      %v960 = vld [vmem:[%s3 + $0x1a8] sm:$0xff]
      %v961 = vld [vmem:[%s3 + $0x1b0] sm:$0xff]
      %v962 = vld [vmem:[%s3 + $0x1b8] sm:$0xff]
      %v963 = vld [vmem:[%s3 + $0x1c0] sm:$0xff]
      %v964 = vld [vmem:[%s3 + $0x1c8] sm:$0xff]
      %v965 = vld [vmem:[%s3 + $0x1d0] sm:$0xff]
      %v966 = vld [vmem:[%s3 + $0x1d8] sm:$0xff]
      %v967 = vld [vmem:[%s3 + $0x1e0] sm:$0xff]
      %v968 = vld [vmem:[%s3 + $0x1e8] sm:$0xff]
      %v969 = vld [vmem:[%s3 + $0x1f0] sm:$0xff]
      %v970 = vld [vmem:[%s3 + $0x1f8] sm:$0xff]
      %v971 = vld [vmem:[%s3 + $0x200] sm:$0xff]
      %v972 = vld [vmem:[%s3 + $0x208] sm:$0xff]
      %v973 = vld [vmem:[%s3 + $0x210] sm:$0xff]
      %v974 = vld [vmem:[%s3 + $0x218] sm:$0xff]
      %v975 = vld [vmem:[%s3 + $0x220] sm:$0xff]
      %v976 = vld [vmem:[%s3 + $0x228] sm:$0xff]
      %v977 = vld [vmem:[%s3 + $0x230] sm:$0xff]
      %v978 = vld [vmem:[%s3 + $0x238] sm:$0xff]
      %v979 = vld [vmem:[%s3 + $0x240] sm:$0xff]
      %v980 = vld [vmem:[%s3 + $0x248] sm:$0xff]
      %v981 = vld [vmem:[%s3 + $0x250] sm:$0xff]
      %v982 = vld [vmem:[%s3 + $0x258] sm:$0xff]
      %v983 = vld [vmem:[%s3 + $0x260] sm:$0xff]
      %v984 = vld [vmem:[%s3 + $0x268] sm:$0xff]
      %v985 = vld [vmem:[%s3 + $0x270] sm:$0xff]
      %v986 = vld [vmem:[%s3 + $0x278] sm:$0xff]
      %v987 = vld [vmem:[%s3 + $0x280] sm:$0xff]
      %v988 = vld [vmem:[%s3 + $0x288] sm:$0xff]
      %v989 = vld [vmem:[%s3 + $0x290] sm:$0xff]
      %v990 = vld [vmem:[%s3 + $0x298] sm:$0xff]
      %v991 = vld [vmem:[%s3 + $0x2a0] sm:$0xff]
      %v992 = vld [vmem:[%s3 + $0x2a8] sm:$0xff]
      %v993 = vld [vmem:[%s3 + $0x2b0] sm:$0xff]
      %v994 = vld [vmem:[%s3 + $0x2b8] sm:$0xff]
      %v995 = vld [vmem:[%s3 + $0x2c0] sm:$0xff]
      %v996 = vld [vmem:[%s3 + $0x2c8] sm:$0xff]
      %v997 = vld [vmem:[%s3 + $0x2d0] sm:$0xff]
      %v998 = vld [vmem:[%s3 + $0x2d8] sm:$0xff]
      %v999 = vld [vmem:[%s3 + $0x2e0] sm:$0xff]
      %v1000 = vld [vmem:[%s3 + $0x2e8] sm:$0xff]
      %v1001 = vld [vmem:[%s3 + $0x2f0] sm:$0xff]
      %v1002 = vld [vmem:[%s3 + $0x2f8] sm:$0xff]
      %v1003 = vld [vmem:[%s3 + $0x300] sm:$0xff]
      %v1004 = vld [vmem:[%s3 + $0x308] sm:$0xff]
      %v1005 = vld [vmem:[%s3 + $0x310] sm:$0xff]
      %v1006 = vld [vmem:[%s3 + $0x318] sm:$0xff]
      %v1007 = vld [vmem:[%s3 + $0x320] sm:$0xff]
      %v1008 = vld [vmem:[%s3 + $0x328] sm:$0xff]
      %v1009 = vld [vmem:[%s3 + $0x330] sm:$0xff]
      %v1010 = vld [vmem:[%s3 + $0x338] sm:$0xff]
      %v1011 = vld [vmem:[%s3 + $0x340] sm:$0xff]
      %v1012 = vld [vmem:[%s3 + $0x348] sm:$0xff]
      %v1013 = vld [vmem:[%s3 + $0x350] sm:$0xff]
      %v1014 = vld [vmem:[%s3 + $0x358] sm:$0xff]
      %v1015 = vld [vmem:[%s3 + $0x360] sm:$0xff]
      %v1016 = vld [vmem:[%s3 + $0x368] sm:$0xff]
      %v1017 = vld [vmem:[%s3 + $0x370] sm:$0xff]
      %v1018 = vld [vmem:[%s3 + $0x378] sm:$0xff]
      %v1019 = vld [vmem:[%s3 + $0x380] sm:$0xff]
      %v1020 = vld [vmem:[%s3 + $0x388] sm:$0xff]
      %v1021 = vld [vmem:[%s3 + $0x390] sm:$0xff]
      %v1022 = vld [vmem:[%s3 + $0x398] sm:$0xff]
      %v1023 = vld [vmem:[%s3 + $0x3a0] sm:$0xff]
      %v1024 = vld [vmem:[%s3 + $0x3a8] sm:$0xff]
      %v1025 = vld [vmem:[%s3 + $0x3b0] sm:$0xff]
      %v1026 = vld [vmem:[%s3 + $0x3b8] sm:$0xff]
      %v1027 = vld [vmem:[%s3 + $0x3c0] sm:$0xff]
      %v1028 = vld [vmem:[%s3 + $0x3c8] sm:$0xff]
      %v1029 = vld [vmem:[%s3 + $0x3d0] sm:$0xff]
      %v1030 = vld [vmem:[%s3 + $0x3d8] sm:$0xff]
      %v1031 = vld [vmem:[%s3 + $0x3e0] sm:$0xff]
      %v1032 = vld [vmem:[%s3 + $0x3e8] sm:$0xff]
      %v1033 = vld [vmem:[%s3 + $0x3f0] sm:$0xff]
      %v1034 = vld [vmem:[%s3 + $0x3f8] sm:$0xff]
      %v1035 = vld [vmem:[%s3 + $0x400] sm:$0xff]
      %v1036 = vld [vmem:[%s3 + $0x408] sm:$0xff]
      %v1037 = vld [vmem:[%s3 + $0x410] sm:$0xff]
      %v1038 = vld [vmem:[%s3 + $0x418] sm:$0xff]
      %v1039 = vld [vmem:[%s3 + $0x420] sm:$0xff]
      %v1040 = vld [vmem:[%s3 + $0x428] sm:$0xff]
      %v1041 = vld [vmem:[%s3 + $0x430] sm:$0xff]
      %v1042 = vld [vmem:[%s3 + $0x438] sm:$0xff]
      %v1043 = vld [vmem:[%s3 + $0x440] sm:$0xff]
      %v1044 = vld [vmem:[%s3 + $0x448] sm:$0xff]
      %v1045 = vld [vmem:[%s3 + $0x450] sm:$0xff]
      %v1046 = vld [vmem:[%s3 + $0x458] sm:$0xff]
      %v1047 = vld [vmem:[%s3 + $0x460] sm:$0xff]
      %v1048 = vld [vmem:[%s3 + $0x468] sm:$0xff]
      %v1049 = vld [vmem:[%s3 + $0x470] sm:$0xff]
      %v1050 = vld [vmem:[%s3 + $0x478] sm:$0xff]
      %v1051 = vld [vmem:[%s3 + $0x480] sm:$0xff]
      %v1052 = vld [vmem:[%s3 + $0x488] sm:$0xff]
      %v1053 = vld [vmem:[%s3 + $0x490] sm:$0xff]
      %v1054 = vld [vmem:[%s3 + $0x498] sm:$0xff]
      %v1055 = vld [vmem:[%s3 + $0x4a0] sm:$0xff]
      %v1056 = vld [vmem:[%s3 + $0x4a8] sm:$0xff]
      %v1057 = vld [vmem:[%s3 + $0x4b0] sm:$0xff]
      %v1058 = vld [vmem:[%s3 + $0x4b8] sm:$0xff]
      %v1059 = vld [vmem:[%s3 + $0x4c0] sm:$0xff]
      %v1060 = vld [vmem:[%s3 + $0x4c8] sm:$0xff]
      %v1061 = vld [vmem:[%s3 + $0x4d0] sm:$0xff]
      %v1062 = vld [vmem:[%s3 + $0x4d8] sm:$0xff]
      %v1063 = vld [vmem:[%s3 + $0x4e0] sm:$0xff]
      %v1064 = vld [vmem:[%s3 + $0x4e8] sm:$0xff]
      %v1065 = vld [vmem:[%s3 + $0x4f0] sm:$0xff]
      %v1066 = vld [vmem:[%s3 + $0x4f8] sm:$0xff]
      %v1067 = vld [vmem:[%s3 + $0x500] sm:$0xff]
      %v1068 = vld [vmem:[%s3 + $0x508] sm:$0xff]
      %v1069 = vld [vmem:[%s3 + $0x510] sm:$0xff]
      %v1070 = vld [vmem:[%s3 + $0x518] sm:$0xff]
      %v1071 = vld [vmem:[%s3 + $0x520] sm:$0xff]
      %v1072 = vld [vmem:[%s3 + $0x528] sm:$0xff]
      %v1073 = vld [vmem:[%s3 + $0x530] sm:$0xff]
      %v1074 = vld [vmem:[%s3 + $0x538] sm:$0xff]
      %v1075 = vld [vmem:[%s3 + $0x540] sm:$0xff]
      %v1076 = vld [vmem:[%s3 + $0x548] sm:$0xff]
      %v1077 = vld [vmem:[%s3 + $0x550] sm:$0xff]
      %v1078 = vld [vmem:[%s3 + $0x558] sm:$0xff]
      %v1079 = vld [vmem:[%s3 + $0x560] sm:$0xff]
      %v1080 = vld [vmem:[%s3 + $0x568] sm:$0xff]
      %v1081 = vld [vmem:[%s3 + $0x570] sm:$0xff]
      %v1082 = vld [vmem:[%s3 + $0x578] sm:$0xff]
      %v1083 = vld [vmem:[%s3 + $0x580] sm:$0xff]
      %v1084 = vld [vmem:[%s3 + $0x588] sm:$0xff]
      %v1085 = vld [vmem:[%s3 + $0x590] sm:$0xff]
      %v1086 = vld [vmem:[%s3 + $0x598] sm:$0xff]
      %v1087 = vld [vmem:[%s3 + $0x5a0] sm:$0xff]
      %v1088 = vld [vmem:[%s3 + $0x5a8] sm:$0xff]
      %v1089 = vld [vmem:[%s3 + $0x5b0] sm:$0xff]
      %v1090 = vld [vmem:[%s3 + $0x5b8] sm:$0xff]
      %v1091 = vld [vmem:[%s3 + $0x5c0] sm:$0xff]
      %v1092 = vld [vmem:[%s3 + $0x5c8] sm:$0xff]
      %v1093 = vld [vmem:[%s3 + $0x5d0] sm:$0xff]
      %v1094 = vld [vmem:[%s3 + $0x5d8] sm:$0xff]
      %v1095 = vld [vmem:[%s3 + $0x5e0] sm:$0xff]
      %v1096 = vld [vmem:[%s3 + $0x5e8] sm:$0xff]
      %v1097 = vld [vmem:[%s3 + $0x5f0] sm:$0xff]
      %v1098 = vld [vmem:[%s3 + $0x5f8] sm:$0xff]
      %v1099 = vld [vmem:[%s3 + $0x600] sm:$0xff]
      %v1100 = vld [vmem:[%s3 + $0x608] sm:$0xff]
      %v1101 = vld [vmem:[%s3 + $0x610] sm:$0xff]
      %v1102 = vld [vmem:[%s3 + $0x618] sm:$0xff]
      %v1103 = vld [vmem:[%s3 + $0x620] sm:$0xff]
      %v1104 = vld [vmem:[%s3 + $0x628] sm:$0xff]
      %v1105 = vld [vmem:[%s3 + $0x630] sm:$0xff]
      %v1106 = vld [vmem:[%s3 + $0x638] sm:$0xff]
      %v1107 = vld [vmem:[%s3 + $0x640] sm:$0xff]
      %v1108 = vld [vmem:[%s3 + $0x648] sm:$0xff]
      %v1109 = vld [vmem:[%s3 + $0x650] sm:$0xff]
      %v1110 = vld [vmem:[%s3 + $0x658] sm:$0xff]
      %v1111 = vld [vmem:[%s3 + $0x660] sm:$0xff]
      %v1112 = vld [vmem:[%s3 + $0x668] sm:$0xff]
      %v1113 = vld [vmem:[%s3 + $0x670] sm:$0xff]
      %v1114 = vld [vmem:[%s3 + $0x678] sm:$0xff]
      %v1115 = vld [vmem:[%s3 + $0x680] sm:$0xff]
      %v1116 = vld [vmem:[%s3 + $0x688] sm:$0xff]
      %v1117 = vld [vmem:[%s3 + $0x690] sm:$0xff]
      %v1118 = vld [vmem:[%s3 + $0x698] sm:$0xff]
      %v1119 = vld [vmem:[%s3 + $0x6a0] sm:$0xff]
      %v1120 = vld [vmem:[%s3 + $0x6a8] sm:$0xff]
      %v1121 = vld [vmem:[%s3 + $0x6b0] sm:$0xff]
      %v1122 = vld [vmem:[%s3 + $0x6b8] sm:$0xff]
      %v1123 = vld [vmem:[%s3 + $0x6c0] sm:$0xff]
      %v1124 = vld [vmem:[%s3 + $0x6c8] sm:$0xff]
      %v1125 = vld [vmem:[%s3 + $0x6d0] sm:$0xff]
      %v1126 = vld [vmem:[%s3 + $0x6d8] sm:$0xff]
      %v1127 = vld [vmem:[%s3 + $0x6e0] sm:$0xff]
      %v1128 = vld [vmem:[%s3 + $0x6e8] sm:$0xff]
      %v1129 = vld [vmem:[%s3 + $0x6f0] sm:$0xff]
      %v1130 = vld [vmem:[%s3 + $0x6f8] sm:$0xff]
      %v1131 = vld [vmem:[%s3 + $0x700] sm:$0xff]
      %v1132 = vld [vmem:[%s3 + $0x708] sm:$0xff]
      %v1133 = vld [vmem:[%s3 + $0x710] sm:$0xff]
      %v1134 = vld [vmem:[%s3 + $0x718] sm:$0xff]
      %v1135 = vld [vmem:[%s3 + $0x720] sm:$0xff]
      %v1136 = vld [vmem:[%s3 + $0x728] sm:$0xff]
      %v1137 = vld [vmem:[%s3 + $0x730] sm:$0xff]
      %v1138 = vld [vmem:[%s3 + $0x738] sm:$0xff]
      %v1139 = vld [vmem:[%s3 + $0x740] sm:$0xff]
      %v1140 = vld [vmem:[%s3 + $0x748] sm:$0xff]
      %v1141 = vld [vmem:[%s3 + $0x750] sm:$0xff]
      %v1142 = vld [vmem:[%s3 + $0x758] sm:$0xff]
      %v1143 = vld [vmem:[%s3 + $0x760] sm:$0xff]
      %v1144 = vld [vmem:[%s3 + $0x768] sm:$0xff]
      %v1145 = vld [vmem:[%s3 + $0x770] sm:$0xff]
      %v1146 = vld [vmem:[%s3 + $0x778] sm:$0xff]
      %v1147 = vld [vmem:[%s4] sm:$0x1]
      %v1149 = vlaneseq
      %v1150 = vshrl.u32 %v1149, 7
      %v1151 = vsub.s32 0, %v1150
      %v1152 = vrot.slane %v1147, %v1151
      %1154 = vmatprep.subr.mxu0 0.0
      %1155 = vmatpush1.msra.mxu0 %v922
      %1156 = vmatprep.subr.mxu0 0.0
      %1157 = vmatpush1.msra.mxu0 %v921
      %1158 = vmatprep.subr.mxu0 0.0
      %1159 = vmatpush1.msra.mxu0 %v920
      %1160 = vmatprep.subr.mxu0 0.0
      %1161 = vmatpush1.msra.mxu0 %v919
      %1162 = vmatprep.subr.mxu0 0.0
      %1163 = vmatpush1.msra.mxu0 %v918
      %1164 = vmatprep.subr.mxu0 0.0
      %1165 = vmatpush1.msra.mxu0 %v917
      %1166 = vmatprep.subr.mxu0 0.0
      %1167 = vmatpush1.msra.mxu0 %v916
      %1168 = vmatprep.subr.mxu0 0.0
      %1169 = vmatpush1.msra.mxu0 %v915
      %1170 = vmatprep.subr.mxu0 0.0
      %1171 = vmatpush1.msra.mxu0 %v914
      %1172 = vmatprep.subr.mxu0 0.0
      %1173 = vmatpush1.msra.mxu0 %v913
      %1174 = vmatprep.subr.mxu0 0.0
      %1175 = vmatpush1.msra.mxu0 %v912
      %1176 = vmatprep.subr.mxu0 0.0
      %1177 = vmatpush1.msra.mxu0 %v911
      %1178 = vmatprep.subr.mxu0 0.0
      %1179 = vmatpush1.msra.mxu0 %v910
      %1180 = vmatprep.subr.mxu0 0.0
      %1181 = vmatpush1.msra.mxu0 %v909
      %1182 = vmatprep.subr.mxu0 0.0
      %1183 = vmatpush1.msra.mxu0 %v908
      %1184 = vmatprep.subr.mxu0 0.0
      %1185 = vmatpush1.msra.mxu0 %v907
      %1186 = vmatprep.subr.mxu0 0.0
      %1187 = vmatpush2.msra.mxu0 %v938
      %1188 = vmatprep.subr.mxu0 0.0
      %1189 = vmatpush2.msra.mxu0 %v937
      %1190 = vmatprep.subr.mxu0 0.0
      %1191 = vmatpush2.msra.mxu0 %v936
      %1192 = vmatprep.subr.mxu0 0.0
      %1193 = vmatpush2.msra.mxu0 %v935
      %1194 = vmatprep.subr.mxu0 0.0
      %1195 = vmatpush2.msra.mxu0 %v934
      %1196 = vmatprep.subr.mxu0 0.0
      %1197 = vmatpush2.msra.mxu0 %v933
      %1198 = vmatprep.subr.mxu0 0.0
      %1199 = vmatpush2.msra.mxu0 %v932
      %1200 = vmatprep.subr.mxu0 0.0
      %1201 = vmatpush2.msra.mxu0 %v931
      %1202 = vmatprep.subr.mxu0 0.0
      %1203 = vmatpush2.msra.mxu0 %v930
      %1204 = vmatprep.subr.mxu0 0.0
      %1205 = vmatpush2.msra.mxu0 %v929
      %1206 = vmatprep.subr.mxu0 0.0
      %1207 = vmatpush2.msra.mxu0 %v928
      %1208 = vmatprep.subr.mxu0 0.0
      %1209 = vmatpush2.msra.mxu0 %v927
      %1210 = vmatprep.subr.mxu0 0.0
      %1211 = vmatpush2.msra.mxu0 %v926
      %1212 = vmatprep.subr.mxu0 0.0
      %1213 = vmatpush2.msra.mxu0 %v925
      %1214 = vmatprep.subr.mxu0 0.0
      %1215 = vmatpush2.msra.mxu0 %v924
      %1216 = vmatprep.subr.mxu0 0.0
      %1217 = vmatpush2.msra.mxu0 %v923
      %1218 = vmatprep.mubr.f32.mxu0 %v667
      %1219 = vmatmul.mubr.f32.gmra.mxu0 0.0
      %v1220 = vpop.f32.mrf.mxu0
      %v1221 = vadd.f32 %v1152, %v1220
      %v1222 = vpop.f32.mrf.mxu0
      %1223 = vmatprep.mubr.f32.mxu0 %v667
      %1224 = vmatmul.mubr.f32.gmra.mxu0 0.0
      %v1225 = vpop.f32.mrf.mxu0
      %v1226 = vadd.f32 %v1152, %v1225
      %v1227 = vpop.f32.mrf.mxu0
      %1228 = vmatprep.mubr.f32.mxu0 %v670
      %1229 = vmatmul.mubr.f32.gmra.mxu0 %v634
      %v1230 = vpop.f32.mrf.mxu0
      %v1231 = vadd.f32 %v1152, %v1230
      %v1232 = vpop.f32.mrf.mxu0
      %1233 = vmatprep.mubr.f32.mxu0 %v672
      %1234 = vmatmul.mubr.f32.gmra.mxu0 %v588
      %v1235 = vpop.f32.mrf.mxu0
      %v1236 = vadd.f32 %v1152, %v1235
      %v1237 = vpop.f32.mrf.mxu0
      %1238 = vmatprep.mubr.f32.mxu0 %v675
      %1239 = vmatmul.mubr.f32.gmra.mxu0 %v635
      %v1240 = vpop.f32.mrf.mxu0
      %v1241 = vadd.f32 %v1152, %v1240
      %v1242 = vpop.f32.mrf.mxu0
      %1243 = vmatprep.mubr.f32.mxu0 %v677
      %1244 = vmatmul.mubr.f32.gmra.mxu0 %v591
      %v1245 = vpop.f32.mrf.mxu0
      %v1246 = vadd.f32 %v1152, %v1245
      %v1247 = vpop.f32.mrf.mxu0
      %1248 = vmatprep.mubr.f32.mxu0 %v680
      %1249 = vmatmul.mubr.f32.gmra.mxu0 %v636
      %v1250 = vpop.f32.mrf.mxu0
      %v1251 = vadd.f32 %v1152, %v1250
      %v1252 = vpop.f32.mrf.mxu0
      %1253 = vmatprep.mubr.f32.mxu0 %v682
      %1254 = vmatmul.mubr.f32.gmra.mxu0 %v594
      %v1255 = vpop.f32.mrf.mxu0
      %v1256 = vadd.f32 %v1152, %v1255
      %v1257 = vpop.f32.mrf.mxu0
      %1258 = vmatprep.mubr.f32.mxu0 %v685
      %1259 = vmatmul.mubr.f32.gmra.mxu0 %v637
      %v1260 = vpop.f32.mrf.mxu0
      %v1261 = vadd.f32 %v1152, %v1260
      %v1262 = vpop.f32.mrf.mxu0
      %1263 = vmatprep.mubr.f32.mxu0 %v687
      %1264 = vmatmul.mubr.f32.gmra.mxu0 %v597
      %v1265 = vpop.f32.mrf.mxu0
      %v1266 = vadd.f32 %v1152, %v1265
      %v1267 = vpop.f32.mrf.mxu0
      %1268 = vmatprep.mubr.f32.mxu0 %v690
      %1269 = vmatmul.mubr.f32.gmra.mxu0 %v638
      %v1270 = vpop.f32.mrf.mxu0
      %v1271 = vadd.f32 %v1152, %v1270
      %v1272 = vpop.f32.mrf.mxu0
      %1273 = vmatprep.mubr.f32.mxu0 %v692
      %1274 = vmatmul.mubr.f32.gmra.mxu0 %v600
      %v1275 = vpop.f32.mrf.mxu0
      %v1276 = vadd.f32 %v1152, %v1275
      %v1277 = vpop.f32.mrf.mxu0
      %1278 = vmatprep.mubr.f32.mxu0 %v695
      %1279 = vmatmul.mubr.f32.gmra.mxu0 %v639
      %v1280 = vpop.f32.mrf.mxu0
      %v1281 = vadd.f32 %v1152, %v1280
      %v1282 = vpop.f32.mrf.mxu0
      %1283 = vmatprep.mubr.f32.mxu0 %v697
      %1284 = vmatmul.mubr.f32.gmra.mxu0 %v603
      %v1285 = vpop.f32.mrf.mxu0
      %v1286 = vadd.f32 %v1152, %v1285
      %v1287 = vpop.f32.mrf.mxu0
      %1288 = vmatprep.mubr.f32.mxu0 %v700
      %1289 = vmatmul.mubr.f32.gmra.mxu0 %v640
      %v1290 = vpop.f32.mrf.mxu0
      %v1291 = vadd.f32 %v1152, %v1290
      %v1292 = vpop.f32.mrf.mxu0
      %1293 = vmatprep.mubr.f32.mxu0 %v702
      %1294 = vmatmul.mubr.f32.gmra.mxu0 %v606
      %v1295 = vpop.f32.mrf.mxu0
      %v1296 = vadd.f32 %v1152, %v1295
      %v1297 = vpop.f32.mrf.mxu0
      %1298 = vdwg.mxu0
      %1299 = vmatprep.subr.mxu0 0.0
      %1300 = vmatpush1.msra.mxu0 %v954
      %1301 = vmatprep.subr.mxu0 0.0
      %1302 = vmatpush1.msra.mxu0 %v953
      %1303 = vmatprep.subr.mxu0 0.0
      %1304 = vmatpush1.msra.mxu0 %v952
      %1305 = vmatprep.subr.mxu0 0.0
      %1306 = vmatpush1.msra.mxu0 %v951
      %1307 = vmatprep.subr.mxu0 0.0
      %1308 = vmatpush1.msra.mxu0 %v950
      %1309 = vmatprep.subr.mxu0 0.0
      %1310 = vmatpush1.msra.mxu0 %v949
      %1311 = vmatprep.subr.mxu0 0.0
      %1312 = vmatpush1.msra.mxu0 %v948
      %1313 = vmatprep.subr.mxu0 0.0
      %1314 = vmatpush1.msra.mxu0 %v947
      %1315 = vmatprep.subr.mxu0 0.0
      %1316 = vmatpush1.msra.mxu0 %v946
      %1317 = vmatprep.subr.mxu0 0.0
      %1318 = vmatpush1.msra.mxu0 %v945
      %1319 = vmatprep.subr.mxu0 0.0
      %1320 = vmatpush1.msra.mxu0 %v944
      %1321 = vmatprep.subr.mxu0 0.0
      %1322 = vmatpush1.msra.mxu0 %v943
      %1323 = vmatprep.subr.mxu0 0.0
      %1324 = vmatpush1.msra.mxu0 %v942
      %1325 = vmatprep.subr.mxu0 0.0
      %1326 = vmatpush1.msra.mxu0 %v941
      %1327 = vmatprep.subr.mxu0 0.0
      %1328 = vmatpush1.msra.mxu0 %v940
      %1329 = vmatprep.subr.mxu0 0.0
      %1330 = vmatpush1.msra.mxu0 %v939
      %1331 = vmatprep.subr.mxu0 0.0
      %1332 = vmatpush2.msra.mxu0 %v970
      %1333 = vmatprep.subr.mxu0 0.0
      %1334 = vmatpush2.msra.mxu0 %v969
      %1335 = vmatprep.subr.mxu0 0.0
      %1336 = vmatpush2.msra.mxu0 %v968
      %1337 = vmatprep.subr.mxu0 0.0
      %1338 = vmatpush2.msra.mxu0 %v967
      %1339 = vmatprep.subr.mxu0 0.0
      %1340 = vmatpush2.msra.mxu0 %v966
      %1341 = vmatprep.subr.mxu0 0.0
      %1342 = vmatpush2.msra.mxu0 %v965
      %1343 = vmatprep.subr.mxu0 0.0
      %1344 = vmatpush2.msra.mxu0 %v964
      %1345 = vmatprep.subr.mxu0 0.0
      %1346 = vmatpush2.msra.mxu0 %v963
      %1347 = vmatprep.subr.mxu0 0.0
      %1348 = vmatpush2.msra.mxu0 %v962
      %1349 = vmatprep.subr.mxu0 0.0
      %1350 = vmatpush2.msra.mxu0 %v961
      %1351 = vmatprep.subr.mxu0 0.0
      %1352 = vmatpush2.msra.mxu0 %v960
      %1353 = vmatprep.subr.mxu0 0.0
      %1354 = vmatpush2.msra.mxu0 %v959
      %1355 = vmatprep.subr.mxu0 0.0
      %1356 = vmatpush2.msra.mxu0 %v958
      %1357 = vmatprep.subr.mxu0 0.0
      %1358 = vmatpush2.msra.mxu0 %v957
      %1359 = vmatprep.subr.mxu0 0.0
      %1360 = vmatpush2.msra.mxu0 %v956
      %1361 = vmatprep.subr.mxu0 0.0
      %1362 = vmatpush2.msra.mxu0 %v955
      %1363 = vmatprep.mubr.f32.mxu0 %v773
      %1364 = vmatmul.mubr.f32.gmra.mxu0 %v720
      %v1365 = vpop.f32.mrf.mxu0
      %v1366 = vadd.f32 %v1221, %v1365
      %v1367 = vpop.f32.mrf.mxu0
      %1368 = vmatprep.mubr.f32.mxu0 %v773
      %1369 = vmatmul.mubr.f32.gmra.mxu0 %v720
      %v1370 = vpop.f32.mrf.mxu0
      %v1371 = vadd.f32 %v1226, %v1370
      %v1372 = vpop.f32.mrf.mxu0
      %1373 = vmatprep.mubr.f32.mxu0 %v776
      %1374 = vmatmul.mubr.f32.gmra.mxu0 %v723
      %v1375 = vpop.f32.mrf.mxu0
      %v1376 = vadd.f32 %v1231, %v1375
      %v1377 = vpop.f32.mrf.mxu0
      %1378 = vmatprep.mubr.f32.mxu0 %v778
      %1379 = vmatmul.mubr.f32.gmra.mxu0 %v725
      %v1380 = vpop.f32.mrf.mxu0
      %v1381 = vadd.f32 %v1236, %v1380
      %v1382 = vpop.f32.mrf.mxu0
      %1383 = vmatprep.mubr.f32.mxu0 %v781
      %1384 = vmatmul.mubr.f32.gmra.mxu0 %v728
      %v1385 = vpop.f32.mrf.mxu0
      %v1386 = vadd.f32 %v1241, %v1385
      %v1387 = vpop.f32.mrf.mxu0
      %1388 = vmatprep.mubr.f32.mxu0 %v783
      %1389 = vmatmul.mubr.f32.gmra.mxu0 %v730
      %v1390 = vpop.f32.mrf.mxu0
      %v1391 = vadd.f32 %v1246, %v1390
      %v1392 = vpop.f32.mrf.mxu0
      %1393 = vmatprep.mubr.f32.mxu0 %v786
      %1394 = vmatmul.mubr.f32.gmra.mxu0 %v733
      %v1395 = vpop.f32.mrf.mxu0
      %v1396 = vadd.f32 %v1251, %v1395
      %v1397 = vpop.f32.mrf.mxu0
      %1398 = vmatprep.mubr.f32.mxu0 %v788
      %1399 = vmatmul.mubr.f32.gmra.mxu0 %v735
      %v1400 = vpop.f32.mrf.mxu0
      %v1401 = vadd.f32 %v1256, %v1400
      %v1402 = vpop.f32.mrf.mxu0
      %1403 = vmatprep.mubr.f32.mxu0 %v791
      %1404 = vmatmul.mubr.f32.gmra.mxu0 %v738
      %v1405 = vpop.f32.mrf.mxu0
      %v1406 = vadd.f32 %v1261, %v1405
      %v1407 = vpop.f32.mrf.mxu0
      %1408 = vmatprep.mubr.f32.mxu0 %v793
      %1409 = vmatmul.mubr.f32.gmra.mxu0 %v740
      %v1410 = vpop.f32.mrf.mxu0
      %v1411 = vadd.f32 %v1266, %v1410
      %v1412 = vpop.f32.mrf.mxu0
      %1413 = vmatprep.mubr.f32.mxu0 %v796
      %1414 = vmatmul.mubr.f32.gmra.mxu0 %v743
      %v1415 = vpop.f32.mrf.mxu0
      %v1416 = vadd.f32 %v1271, %v1415
      %v1417 = vpop.f32.mrf.mxu0
      %1418 = vmatprep.mubr.f32.mxu0 %v798
      %1419 = vmatmul.mubr.f32.gmra.mxu0 %v745
      %v1420 = vpop.f32.mrf.mxu0
      %v1421 = vadd.f32 %v1276, %v1420
      %v1422 = vpop.f32.mrf.mxu0
      %1423 = vmatprep.mubr.f32.mxu0 %v801
      %1424 = vmatmul.mubr.f32.gmra.mxu0 %v748
      %v1425 = vpop.f32.mrf.mxu0
      %v1426 = vadd.f32 %v1281, %v1425
      %v1427 = vpop.f32.mrf.mxu0
      %1428 = vmatprep.mubr.f32.mxu0 %v803
      %1429 = vmatmul.mubr.f32.gmra.mxu0 %v750
      %v1430 = vpop.f32.mrf.mxu0
      %v1431 = vadd.f32 %v1286, %v1430
      %v1432 = vpop.f32.mrf.mxu0
      %1433 = vmatprep.mubr.f32.mxu0 %v806
      %1434 = vmatmul.mubr.f32.gmra.mxu0 %v753
      %v1435 = vpop.f32.mrf.mxu0
      %v1436 = vadd.f32 %v1291, %v1435
      %v1437 = vpop.f32.mrf.mxu0
      %1438 = vmatprep.mubr.f32.mxu0 %v808
      %1439 = vmatmul.mubr.f32.gmra.mxu0 %v755
      %v1440 = vpop.f32.mrf.mxu0
      %v1441 = vadd.f32 %v1296, %v1440
      %v1442 = vpop.f32.mrf.mxu0
      %1443 = vdwg.mxu0
      %1444 = vmatprep.subr.mxu0 0.0
      %1445 = vmatpush1.msra.mxu0 %v986
      %1446 = vmatprep.subr.mxu0 0.0
      %1447 = vmatpush1.msra.mxu0 %v985
      %1448 = vmatprep.subr.mxu0 0.0
      %1449 = vmatpush1.msra.mxu0 %v984
      %1450 = vmatprep.subr.mxu0 0.0
      %1451 = vmatpush1.msra.mxu0 %v983
      %1452 = vmatprep.subr.mxu0 0.0
      %1453 = vmatpush1.msra.mxu0 %v982
      %1454 = vmatprep.subr.mxu0 0.0
      %1455 = vmatpush1.msra.mxu0 %v981
      %1456 = vmatprep.subr.mxu0 0.0
      %1457 = vmatpush1.msra.mxu0 %v980
      %1458 = vmatprep.subr.mxu0 0.0
      %1459 = vmatpush1.msra.mxu0 %v979
      %1460 = vmatprep.subr.mxu0 0.0
      %1461 = vmatpush1.msra.mxu0 %v978
      %1462 = vmatprep.subr.mxu0 0.0
      %1463 = vmatpush1.msra.mxu0 %v977
      %1464 = vmatprep.subr.mxu0 0.0
      %1465 = vmatpush1.msra.mxu0 %v976
      %1466 = vmatprep.subr.mxu0 0.0
      %1467 = vmatpush1.msra.mxu0 %v975
      %1468 = vmatprep.subr.mxu0 0.0
      %1469 = vmatpush1.msra.mxu0 %v974
      %1470 = vmatprep.subr.mxu0 0.0
      %1471 = vmatpush1.msra.mxu0 %v973
      %1472 = vmatprep.subr.mxu0 0.0
      %1473 = vmatpush1.msra.mxu0 %v972
      %1474 = vmatprep.subr.mxu0 0.0
      %1475 = vmatpush1.msra.mxu0 %v971
      %1476 = vmatprep.subr.mxu0 0.0
      %1477 = vmatpush2.msra.mxu0 %v1002
      %1478 = vmatprep.subr.mxu0 0.0
      %1479 = vmatpush2.msra.mxu0 %v1001
      %1480 = vmatprep.subr.mxu0 0.0
      %1481 = vmatpush2.msra.mxu0 %v1000
      %1482 = vmatprep.subr.mxu0 0.0
      %1483 = vmatpush2.msra.mxu0 %v999
      %1484 = vmatprep.subr.mxu0 0.0
      %1485 = vmatpush2.msra.mxu0 %v998
      %1486 = vmatprep.subr.mxu0 0.0
      %1487 = vmatpush2.msra.mxu0 %v997
      %1488 = vmatprep.subr.mxu0 0.0
      %1489 = vmatpush2.msra.mxu0 %v996
      %1490 = vmatprep.subr.mxu0 0.0
      %1491 = vmatpush2.msra.mxu0 %v995
      %1492 = vmatprep.subr.mxu0 0.0
      %1493 = vmatpush2.msra.mxu0 %v994
      %1494 = vmatprep.subr.mxu0 0.0
      %1495 = vmatpush2.msra.mxu0 %v993
      %1496 = vmatprep.subr.mxu0 0.0
      %1497 = vmatpush2.msra.mxu0 %v992
      %1498 = vmatprep.subr.mxu0 0.0
      %1499 = vmatpush2.msra.mxu0 %v991
      %1500 = vmatprep.subr.mxu0 0.0
      %1501 = vmatpush2.msra.mxu0 %v990
      %1502 = vmatprep.subr.mxu0 0.0
      %1503 = vmatpush2.msra.mxu0 %v989
      %1504 = vmatprep.subr.mxu0 0.0
      %1505 = vmatpush2.msra.mxu0 %v988
      %1506 = vmatprep.subr.mxu0 0.0
      %1507 = vmatpush2.msra.mxu0 %v987
      %1508 = vmatprep.mubr.f32.mxu0 %v634
      %1509 = vmatmul.mubr.f32.gmra.mxu0 %v826
      %v1510 = vpop.f32.mrf.mxu0
      %v1511 = vadd.f32 %v1366, %v1510
      %v1512 = vpop.f32.mrf.mxu0
      %1513 = vmatprep.mubr.f32.mxu0 %v588
      %1514 = vmatmul.mubr.f32.gmra.mxu0 %v826
      %v1515 = vpop.f32.mrf.mxu0
      %v1516 = vadd.f32 %v1371, %v1515
      %v1517 = vpop.f32.mrf.mxu0
      %1518 = vmatprep.mubr.f32.mxu0 %v635
      %1519 = vmatmul.mubr.f32.gmra.mxu0 %v829
      %v1520 = vpop.f32.mrf.mxu0
      %v1521 = vadd.f32 %v1376, %v1520
      %v1522 = vpop.f32.mrf.mxu0
      %1523 = vmatprep.mubr.f32.mxu0 %v591
      %1524 = vmatmul.mubr.f32.gmra.mxu0 %v831
      %v1525 = vpop.f32.mrf.mxu0
      %v1526 = vadd.f32 %v1381, %v1525
      %v1527 = vpop.f32.mrf.mxu0
      %1528 = vmatprep.mubr.f32.mxu0 %v636
      %1529 = vmatmul.mubr.f32.gmra.mxu0 %v834
      %v1530 = vpop.f32.mrf.mxu0
      %v1531 = vadd.f32 %v1386, %v1530
      %v1532 = vpop.f32.mrf.mxu0
      %1533 = vmatprep.mubr.f32.mxu0 %v594
      %1534 = vmatmul.mubr.f32.gmra.mxu0 %v836
      %v1535 = vpop.f32.mrf.mxu0
      %v1536 = vadd.f32 %v1391, %v1535
      %v1537 = vpop.f32.mrf.mxu0
      %1538 = vmatprep.mubr.f32.mxu0 %v637
      %1539 = vmatmul.mubr.f32.gmra.mxu0 %v839
      %v1540 = vpop.f32.mrf.mxu0
      %v1541 = vadd.f32 %v1396, %v1540
      %v1542 = vpop.f32.mrf.mxu0
      %1543 = vmatprep.mubr.f32.mxu0 %v597
      %1544 = vmatmul.mubr.f32.gmra.mxu0 %v841
      %v1545 = vpop.f32.mrf.mxu0
      %v1546 = vadd.f32 %v1401, %v1545
      %v1547 = vpop.f32.mrf.mxu0
      %1548 = vmatprep.mubr.f32.mxu0 %v638
      %1549 = vmatmul.mubr.f32.gmra.mxu0 %v844
      %v1550 = vpop.f32.mrf.mxu0
      %v1551 = vadd.f32 %v1406, %v1550
      %v1552 = vpop.f32.mrf.mxu0
      %1553 = vmatprep.mubr.f32.mxu0 %v600
      %1554 = vmatmul.mubr.f32.gmra.mxu0 %v846
      %v1555 = vpop.f32.mrf.mxu0
      %v1556 = vadd.f32 %v1411, %v1555
      %v1557 = vpop.f32.mrf.mxu0
      %1558 = vmatprep.mubr.f32.mxu0 %v639
      %1559 = vmatmul.mubr.f32.gmra.mxu0 %v849
      %v1560 = vpop.f32.mrf.mxu0
      %v1561 = vadd.f32 %v1416, %v1560
      %v1562 = vpop.f32.mrf.mxu0
      %1563 = vmatprep.mubr.f32.mxu0 %v603
      %1564 = vmatmul.mubr.f32.gmra.mxu0 %v851
      %v1565 = vpop.f32.mrf.mxu0
      %v1566 = vadd.f32 %v1421, %v1565
      %v1567 = vpop.f32.mrf.mxu0
      %1568 = vmatprep.mubr.f32.mxu0 %v640
      %1569 = vmatmul.mubr.f32.gmra.mxu0 %v854
      %v1570 = vpop.f32.mrf.mxu0
      %v1571 = vadd.f32 %v1426, %v1570
      %v1572 = vpop.f32.mrf.mxu0
      %1573 = vmatprep.mubr.f32.mxu0 %v606
      %1574 = vmatmul.mubr.f32.gmra.mxu0 %v856
      %v1575 = vpop.f32.mrf.mxu0
      %v1576 = vadd.f32 %v1431, %v1575
      %v1577 = vpop.f32.mrf.mxu0
      %1578 = vmatprep.mubr.f32.mxu0 %v641
      %1579 = vmatmul.mubr.f32.gmra.mxu0 %v859
      %v1580 = vpop.f32.mrf.mxu0
      %v1581 = vadd.f32 %v1436, %v1580
      %v1582 = vpop.f32.mrf.mxu0
      %1583 = vmatprep.mubr.f32.mxu0 %v609
      %1584 = vmatmul.mubr.f32.gmra.mxu0 %v861
      %v1585 = vpop.f32.mrf.mxu0
      %v1586 = vadd.f32 %v1441, %v1585
      %v1587 = vpop.f32.mrf.mxu0
      %1588 = vdwg.mxu0
      %1589 = vmatprep.subr.mxu0 0.0
      %1590 = vmatpush1.msra.mxu0 %v1018
      %1591 = vmatprep.subr.mxu0 0.0
      %1592 = vmatpush1.msra.mxu0 %v1017
      %1593 = vmatprep.subr.mxu0 0.0
      %1594 = vmatpush1.msra.mxu0 %v1016
      %1595 = vmatprep.subr.mxu0 0.0
      %1596 = vmatpush1.msra.mxu0 %v1015
      %1597 = vmatprep.subr.mxu0 0.0
      %1598 = vmatpush1.msra.mxu0 %v1014
      %1599 = vmatprep.subr.mxu0 0.0
      %1600 = vmatpush1.msra.mxu0 %v1013
      %1601 = vmatprep.subr.mxu0 0.0
      %1602 = vmatpush1.msra.mxu0 %v1012
      %1603 = vmatprep.subr.mxu0 0.0
      %1604 = vmatpush1.msra.mxu0 %v1011
      %1605 = vmatprep.subr.mxu0 0.0
      %1606 = vmatpush1.msra.mxu0 %v1010
      %1607 = vmatprep.subr.mxu0 0.0
      %1608 = vmatpush1.msra.mxu0 %v1009
      %1609 = vmatprep.subr.mxu0 0.0
      %1610 = vmatpush1.msra.mxu0 %v1008
      %1611 = vmatprep.subr.mxu0 0.0
      %1612 = vmatpush1.msra.mxu0 %v1007
      %1613 = vmatprep.subr.mxu0 0.0
      %1614 = vmatpush1.msra.mxu0 %v1006
      %1615 = vmatprep.subr.mxu0 0.0
      %1616 = vmatpush1.msra.mxu0 %v1005
      %1617 = vmatprep.subr.mxu0 0.0
      %1618 = vmatpush1.msra.mxu0 %v1004
      %1619 = vmatprep.subr.mxu0 0.0
      %1620 = vmatpush1.msra.mxu0 %v1003
      %1621 = vmatprep.subr.mxu0 0.0
      %1622 = vmatpush2.msra.mxu0 %v1034
      %1623 = vmatprep.subr.mxu0 0.0
      %1624 = vmatpush2.msra.mxu0 %v1033
      %1625 = vmatprep.subr.mxu0 0.0
      %1626 = vmatpush2.msra.mxu0 %v1032
      %1627 = vmatprep.subr.mxu0 0.0
      %1628 = vmatpush2.msra.mxu0 %v1031
      %1629 = vmatprep.subr.mxu0 0.0
      %1630 = vmatpush2.msra.mxu0 %v1030
      %1631 = vmatprep.subr.mxu0 0.0
      %1632 = vmatpush2.msra.mxu0 %v1029
      %1633 = vmatprep.subr.mxu0 0.0
      %1634 = vmatpush2.msra.mxu0 %v1028
      %1635 = vmatprep.subr.mxu0 0.0
      %1636 = vmatpush2.msra.mxu0 %v1027
      %1637 = vmatprep.subr.mxu0 0.0
      %1638 = vmatpush2.msra.mxu0 %v1026
      %1639 = vmatprep.subr.mxu0 0.0
      %1640 = vmatpush2.msra.mxu0 %v1025
      %1641 = vmatprep.subr.mxu0 0.0
      %1642 = vmatpush2.msra.mxu0 %v1024
      %1643 = vmatprep.subr.mxu0 0.0
      %1644 = vmatpush2.msra.mxu0 %v1023
      %1645 = vmatprep.subr.mxu0 0.0
      %1646 = vmatpush2.msra.mxu0 %v1022
      %1647 = vmatprep.subr.mxu0 0.0
      %1648 = vmatpush2.msra.mxu0 %v1021
      %1649 = vmatprep.subr.mxu0 0.0
      %1650 = vmatpush2.msra.mxu0 %v1020
      %1651 = vmatprep.subr.mxu0 0.0
      %1652 = vmatpush2.msra.mxu0 %v1019
      %1653 = vmatprep.mubr.f32.mxu0 %v723
      %1654 = vmatmul.mubr.f32.gmra.mxu0 %v670
      %v1655 = vpop.f32.mrf.mxu0
      %v1656 = vadd.f32 %v1511, %v1655
      %v1657 = vpop.f32.mrf.mxu0
      %1658 = vmatprep.mubr.f32.mxu0 %v725
      %1659 = vmatmul.mubr.f32.gmra.mxu0 %v672
      %v1660 = vpop.f32.mrf.mxu0
      %v1661 = vadd.f32 %v1516, %v1660
      %v1662 = vpop.f32.mrf.mxu0
      %1663 = vmatprep.mubr.f32.mxu0 %v728
      %1664 = vmatmul.mubr.f32.gmra.mxu0 %v675
      %v1665 = vpop.f32.mrf.mxu0
      %v1666 = vadd.f32 %v1521, %v1665
      %v1667 = vpop.f32.mrf.mxu0
      %1668 = vmatprep.mubr.f32.mxu0 %v730
      %1669 = vmatmul.mubr.f32.gmra.mxu0 %v677
      %v1670 = vpop.f32.mrf.mxu0
      %v1671 = vadd.f32 %v1526, %v1670
      %v1672 = vpop.f32.mrf.mxu0
      %1673 = vmatprep.mubr.f32.mxu0 %v733
      %1674 = vmatmul.mubr.f32.gmra.mxu0 %v680
      %v1675 = vpop.f32.mrf.mxu0
      %v1676 = vadd.f32 %v1531, %v1675
      %v1677 = vpop.f32.mrf.mxu0
      %1678 = vmatprep.mubr.f32.mxu0 %v735
      %1679 = vmatmul.mubr.f32.gmra.mxu0 %v682
      %v1680 = vpop.f32.mrf.mxu0
      %v1681 = vadd.f32 %v1536, %v1680
      %v1682 = vpop.f32.mrf.mxu0
      %1683 = vmatprep.mubr.f32.mxu0 %v738
      %1684 = vmatmul.mubr.f32.gmra.mxu0 %v685
      %v1685 = vpop.f32.mrf.mxu0
      %v1686 = vadd.f32 %v1541, %v1685
      %v1687 = vpop.f32.mrf.mxu0
      %1688 = vmatprep.mubr.f32.mxu0 %v740
      %1689 = vmatmul.mubr.f32.gmra.mxu0 %v687
      %v1690 = vpop.f32.mrf.mxu0
      %v1691 = vadd.f32 %v1546, %v1690
      %v1692 = vpop.f32.mrf.mxu0
      %1693 = vmatprep.mubr.f32.mxu0 %v743
      %1694 = vmatmul.mubr.f32.gmra.mxu0 %v690
      %v1695 = vpop.f32.mrf.mxu0
      %v1696 = vadd.f32 %v1551, %v1695
      %v1697 = vpop.f32.mrf.mxu0
      %1698 = vmatprep.mubr.f32.mxu0 %v745
      %1699 = vmatmul.mubr.f32.gmra.mxu0 %v692
      %v1700 = vpop.f32.mrf.mxu0
      %v1701 = vadd.f32 %v1556, %v1700
      %v1702 = vpop.f32.mrf.mxu0
      %1703 = vmatprep.mubr.f32.mxu0 %v748
      %1704 = vmatmul.mubr.f32.gmra.mxu0 %v695
      %v1705 = vpop.f32.mrf.mxu0
      %v1706 = vadd.f32 %v1561, %v1705
      %v1707 = vpop.f32.mrf.mxu0
      %1708 = vmatprep.mubr.f32.mxu0 %v750
      %1709 = vmatmul.mubr.f32.gmra.mxu0 %v697
      %v1710 = vpop.f32.mrf.mxu0
      %v1711 = vadd.f32 %v1566, %v1710
      %v1712 = vpop.f32.mrf.mxu0
      %1713 = vmatprep.mubr.f32.mxu0 %v753
      %1714 = vmatmul.mubr.f32.gmra.mxu0 %v700
      %v1715 = vpop.f32.mrf.mxu0
      %v1716 = vadd.f32 %v1571, %v1715
      %v1717 = vpop.f32.mrf.mxu0
      %1718 = vmatprep.mubr.f32.mxu0 %v755
      %1719 = vmatmul.mubr.f32.gmra.mxu0 %v702
      %v1720 = vpop.f32.mrf.mxu0
      %v1721 = vadd.f32 %v1576, %v1720
      %v1722 = vpop.f32.mrf.mxu0
      %1723 = vmatprep.mubr.f32.mxu0 %v888
      %1724 = vmatmul.mubr.f32.gmra.mxu0 %v881
      %v1725 = vpop.f32.mrf.mxu0
      %v1726 = vadd.f32 %v1581, %v1725
      %v1727 = vpop.f32.mrf.mxu0
      %1728 = vmatprep.mubr.f32.mxu0 %v890
      %1729 = vmatmul.mubr.f32.gmra.mxu0 %v883
      %v1730 = vpop.f32.mrf.mxu0
      %v1731 = vadd.f32 %v1586, %v1730
      %v1732 = vpop.f32.mrf.mxu0
      %1733 = vdwg.mxu0
      %1734 = vmatprep.subr.mxu0 0.0
      %1735 = vmatpush1.msra.mxu0 %v1050
      %1736 = vmatprep.subr.mxu0 0.0
      %1737 = vmatpush1.msra.mxu0 %v1049
      %1738 = vmatprep.subr.mxu0 0.0
      %1739 = vmatpush1.msra.mxu0 %v1048
      %1740 = vmatprep.subr.mxu0 0.0
      %1741 = vmatpush1.msra.mxu0 %v1047
      %1742 = vmatprep.subr.mxu0 0.0
      %1743 = vmatpush1.msra.mxu0 %v1046
      %1744 = vmatprep.subr.mxu0 0.0
      %1745 = vmatpush1.msra.mxu0 %v1045
      %1746 = vmatprep.subr.mxu0 0.0
      %1747 = vmatpush1.msra.mxu0 %v1044
      %1748 = vmatprep.subr.mxu0 0.0
      %1749 = vmatpush1.msra.mxu0 %v1043
      %1750 = vmatprep.subr.mxu0 0.0
      %1751 = vmatpush1.msra.mxu0 %v1042
      %1752 = vmatprep.subr.mxu0 0.0
      %1753 = vmatpush1.msra.mxu0 %v1041
      %1754 = vmatprep.subr.mxu0 0.0
      %1755 = vmatpush1.msra.mxu0 %v1040
      %1756 = vmatprep.subr.mxu0 0.0
      %1757 = vmatpush1.msra.mxu0 %v1039
      %1758 = vmatprep.subr.mxu0 0.0
      %1759 = vmatpush1.msra.mxu0 %v1038
      %1760 = vmatprep.subr.mxu0 0.0
      %1761 = vmatpush1.msra.mxu0 %v1037
      %1762 = vmatprep.subr.mxu0 0.0
      %1763 = vmatpush1.msra.mxu0 %v1036
      %1764 = vmatprep.subr.mxu0 0.0
      %1765 = vmatpush1.msra.mxu0 %v1035
      %1766 = vmatprep.subr.mxu0 0.0
      %1767 = vmatpush2.msra.mxu0 %v1066
      %1768 = vmatprep.subr.mxu0 0.0
      %1769 = vmatpush2.msra.mxu0 %v1065
      %1770 = vmatprep.subr.mxu0 0.0
      %1771 = vmatpush2.msra.mxu0 %v1064
      %1772 = vmatprep.subr.mxu0 0.0
      %1773 = vmatpush2.msra.mxu0 %v1063
      %1774 = vmatprep.subr.mxu0 0.0
      %1775 = vmatpush2.msra.mxu0 %v1062
      %1776 = vmatprep.subr.mxu0 0.0
      %1777 = vmatpush2.msra.mxu0 %v1061
      %1778 = vmatprep.subr.mxu0 0.0
      %1779 = vmatpush2.msra.mxu0 %v1060
      %1780 = vmatprep.subr.mxu0 0.0
      %1781 = vmatpush2.msra.mxu0 %v1059
      %1782 = vmatprep.subr.mxu0 0.0
      %1783 = vmatpush2.msra.mxu0 %v1058
      %1784 = vmatprep.subr.mxu0 0.0
      %1785 = vmatpush2.msra.mxu0 %v1057
      %1786 = vmatprep.subr.mxu0 0.0
      %1787 = vmatpush2.msra.mxu0 %v1056
      %1788 = vmatprep.subr.mxu0 0.0
      %1789 = vmatpush2.msra.mxu0 %v1055
      %1790 = vmatprep.subr.mxu0 0.0
      %1791 = vmatpush2.msra.mxu0 %v1054
      %1792 = vmatprep.subr.mxu0 0.0
      %1793 = vmatpush2.msra.mxu0 %v1053
      %1794 = vmatprep.subr.mxu0 0.0
      %1795 = vmatpush2.msra.mxu0 %v1052
      %1796 = vmatprep.subr.mxu0 0.0
      %1797 = vmatpush2.msra.mxu0 %v1051
      %1798 = vmatprep.mubr.f32.mxu0 %v829
      %1799 = vmatmul.mubr.f32.gmra.mxu0 %v776
      %v1800 = vpop.f32.mrf.mxu0
      %v1801 = vadd.f32 %v1656, %v1800
      %v1802 = vpop.f32.mrf.mxu0
      %1803 = vmatprep.mubr.f32.mxu0 %v831
      %1804 = vmatmul.mubr.f32.gmra.mxu0 %v778
      %v1805 = vpop.f32.mrf.mxu0
      %v1806 = vadd.f32 %v1661, %v1805
      %v1807 = vpop.f32.mrf.mxu0
      %1808 = vmatprep.mubr.f32.mxu0 %v834
      %1809 = vmatmul.mubr.f32.gmra.mxu0 %v781
      %v1810 = vpop.f32.mrf.mxu0
      %v1811 = vadd.f32 %v1666, %v1810
      %v1812 = vpop.f32.mrf.mxu0
      %1813 = vmatprep.mubr.f32.mxu0 %v836
      %1814 = vmatmul.mubr.f32.gmra.mxu0 %v783
      %v1815 = vpop.f32.mrf.mxu0
      %v1816 = vadd.f32 %v1671, %v1815
      %v1817 = vpop.f32.mrf.mxu0
      %1818 = vmatprep.mubr.f32.mxu0 %v839
      %1819 = vmatmul.mubr.f32.gmra.mxu0 %v786
      %v1820 = vpop.f32.mrf.mxu0
      %v1821 = vadd.f32 %v1676, %v1820
      %v1822 = vpop.f32.mrf.mxu0
      %1823 = vmatprep.mubr.f32.mxu0 %v841
      %1824 = vmatmul.mubr.f32.gmra.mxu0 %v788
      %v1825 = vpop.f32.mrf.mxu0
      %v1826 = vadd.f32 %v1681, %v1825
      %v1827 = vpop.f32.mrf.mxu0
      %1828 = vmatprep.mubr.f32.mxu0 %v844
      %1829 = vmatmul.mubr.f32.gmra.mxu0 %v791
      %v1830 = vpop.f32.mrf.mxu0
      %v1831 = vadd.f32 %v1686, %v1830
      %v1832 = vpop.f32.mrf.mxu0
      %1833 = vmatprep.mubr.f32.mxu0 %v846
      %1834 = vmatmul.mubr.f32.gmra.mxu0 %v793
      %v1835 = vpop.f32.mrf.mxu0
      %v1836 = vadd.f32 %v1691, %v1835
      %v1837 = vpop.f32.mrf.mxu0
      %1838 = vmatprep.mubr.f32.mxu0 %v849
      %1839 = vmatmul.mubr.f32.gmra.mxu0 %v796
      %v1840 = vpop.f32.mrf.mxu0
      %v1841 = vadd.f32 %v1696, %v1840
      %v1842 = vpop.f32.mrf.mxu0
      %1843 = vmatprep.mubr.f32.mxu0 %v851
      %1844 = vmatmul.mubr.f32.gmra.mxu0 %v798
      %v1845 = vpop.f32.mrf.mxu0
      %v1846 = vadd.f32 %v1701, %v1845
      %v1847 = vpop.f32.mrf.mxu0
      %1848 = vmatprep.mubr.f32.mxu0 %v854
      %1849 = vmatmul.mubr.f32.gmra.mxu0 %v801
      %v1850 = vpop.f32.mrf.mxu0
      %v1851 = vadd.f32 %v1706, %v1850
      %v1852 = vpop.f32.mrf.mxu0
      %1853 = vmatprep.mubr.f32.mxu0 %v856
      %1854 = vmatmul.mubr.f32.gmra.mxu0 %v803
      %v1855 = vpop.f32.mrf.mxu0
      %v1856 = vadd.f32 %v1711, %v1855
      %v1857 = vpop.f32.mrf.mxu0
      %1858 = vmatprep.mubr.f32.mxu0 %v859
      %1859 = vmatmul.mubr.f32.gmra.mxu0 %v806
      %v1860 = vpop.f32.mrf.mxu0
      %v1861 = vadd.f32 %v1716, %v1860
      %v1862 = vpop.f32.mrf.mxu0
      %1863 = vmatprep.mubr.f32.mxu0 %v861
      %1864 = vmatmul.mubr.f32.gmra.mxu0 %v808
      %v1865 = vpop.f32.mrf.mxu0
      %v1866 = vadd.f32 %v1721, %v1865
      %v1867 = vpop.f32.mrf.mxu0
      %1868 = vmatprep.mubr.f32.mxu0 %v902
      %1869 = vmatmul.mubr.f32.gmra.mxu0 %v895
      %v1870 = vpop.f32.mrf.mxu0
      %v1871 = vadd.f32 %v1726, %v1870
      %v1872 = vpop.f32.mrf.mxu0
      %1873 = vmatprep.mubr.f32.mxu0 %v904
      %1874 = vmatmul.mubr.f32.gmra.mxu0 %v897
      %v1875 = vpop.f32.mrf.mxu0
      %v1876 = vadd.f32 %v1731, %v1875
      %v1877 = vpop.f32.mrf.mxu0
      %1878 = vdwg.mxu0
      %1879 = vmatprep.subr.mxu0 0.0
      %1880 = vmatpush1.msra.mxu0 %v1082
      %1881 = vmatprep.subr.mxu0 0.0
      %1882 = vmatpush1.msra.mxu0 %v1081
      %1883 = vmatprep.subr.mxu0 0.0
      %1884 = vmatpush1.msra.mxu0 %v1080
      %1885 = vmatprep.subr.mxu0 0.0
      %1886 = vmatpush1.msra.mxu0 %v1079
      %1887 = vmatprep.subr.mxu0 0.0
      %1888 = vmatpush1.msra.mxu0 %v1078
      %1889 = vmatprep.subr.mxu0 0.0
      %1890 = vmatpush1.msra.mxu0 %v1077
      %1891 = vmatprep.subr.mxu0 0.0
      %1892 = vmatpush1.msra.mxu0 %v1076
      %1893 = vmatprep.subr.mxu0 0.0
      %1894 = vmatpush1.msra.mxu0 %v1075
      %1895 = vmatprep.subr.mxu0 0.0
      %1896 = vmatpush1.msra.mxu0 %v1074
      %1897 = vmatprep.subr.mxu0 0.0
      %1898 = vmatpush1.msra.mxu0 %v1073
      %1899 = vmatprep.subr.mxu0 0.0
      %1900 = vmatpush1.msra.mxu0 %v1072
      %1901 = vmatprep.subr.mxu0 0.0
      %1902 = vmatpush1.msra.mxu0 %v1071
      %1903 = vmatprep.subr.mxu0 0.0
      %1904 = vmatpush1.msra.mxu0 %v1070
      %1905 = vmatprep.subr.mxu0 0.0
      %1906 = vmatpush1.msra.mxu0 %v1069
      %1907 = vmatprep.subr.mxu0 0.0
      %1908 = vmatpush1.msra.mxu0 %v1068
      %1909 = vmatprep.subr.mxu0 0.0
      %1910 = vmatpush1.msra.mxu0 %v1067
      %1911 = vmatprep.subr.mxu0 0.0
      %1912 = vmatpush2.msra.mxu0 %v1098
      %1913 = vmatprep.subr.mxu0 0.0
      %1914 = vmatpush2.msra.mxu0 %v1097
      %1915 = vmatprep.subr.mxu0 0.0
      %1916 = vmatpush2.msra.mxu0 %v1096
      %1917 = vmatprep.subr.mxu0 0.0
      %1918 = vmatpush2.msra.mxu0 %v1095
      %1919 = vmatprep.subr.mxu0 0.0
      %1920 = vmatpush2.msra.mxu0 %v1094
      %1921 = vmatprep.subr.mxu0 0.0
      %1922 = vmatpush2.msra.mxu0 %v1093
      %1923 = vmatprep.subr.mxu0 0.0
      %1924 = vmatpush2.msra.mxu0 %v1092
      %1925 = vmatprep.subr.mxu0 0.0
      %1926 = vmatpush2.msra.mxu0 %v1091
      %1927 = vmatprep.subr.mxu0 0.0
      %1928 = vmatpush2.msra.mxu0 %v1090
      %1929 = vmatprep.subr.mxu0 0.0
      %1930 = vmatpush2.msra.mxu0 %v1089
      %1931 = vmatprep.subr.mxu0 0.0
      %1932 = vmatpush2.msra.mxu0 %v1088
      %1933 = vmatprep.subr.mxu0 0.0
      %1934 = vmatpush2.msra.mxu0 %v1087
      %1935 = vmatprep.subr.mxu0 0.0
      %1936 = vmatpush2.msra.mxu0 %v1086
      %1937 = vmatprep.subr.mxu0 0.0
      %1938 = vmatpush2.msra.mxu0 %v1085
      %1939 = vmatprep.subr.mxu0 0.0
      %1940 = vmatpush2.msra.mxu0 %v1084
      %1941 = vmatprep.subr.mxu0 0.0
      %1942 = vmatpush2.msra.mxu0 %v1083
      %1943 = vmatprep.mubr.f32.mxu0 %v675
      %1944 = vmatmul.mubr.f32.gmra.mxu0 %v635
      %v1945 = vpop.f32.mrf.mxu0
      %v1946 = vadd.f32 %v1801, %v1945
      %v1947 = vpop.f32.mrf.mxu0
      %1948 = vmatprep.mubr.f32.mxu0 %v677
      %1949 = vmatmul.mubr.f32.gmra.mxu0 %v591
      %v1950 = vpop.f32.mrf.mxu0
      %v1951 = vadd.f32 %v1806, %v1950
      %v1952 = vpop.f32.mrf.mxu0
      %1953 = vmatprep.mubr.f32.mxu0 %v680
      %1954 = vmatmul.mubr.f32.gmra.mxu0 %v636
      %v1955 = vpop.f32.mrf.mxu0
      %v1956 = vadd.f32 %v1811, %v1955
      %v1957 = vpop.f32.mrf.mxu0
      %1958 = vmatprep.mubr.f32.mxu0 %v682
      %1959 = vmatmul.mubr.f32.gmra.mxu0 %v594
      %v1960 = vpop.f32.mrf.mxu0
      %v1961 = vadd.f32 %v1816, %v1960
      %v1962 = vpop.f32.mrf.mxu0
      %1963 = vmatprep.mubr.f32.mxu0 %v685
      %1964 = vmatmul.mubr.f32.gmra.mxu0 %v637
      %v1965 = vpop.f32.mrf.mxu0
      %v1966 = vadd.f32 %v1821, %v1965
      %v1967 = vpop.f32.mrf.mxu0
      %1968 = vmatprep.mubr.f32.mxu0 %v687
      %1969 = vmatmul.mubr.f32.gmra.mxu0 %v597
      %v1970 = vpop.f32.mrf.mxu0
      %v1971 = vadd.f32 %v1826, %v1970
      %v1972 = vpop.f32.mrf.mxu0
      %1973 = vmatprep.mubr.f32.mxu0 %v690
      %1974 = vmatmul.mubr.f32.gmra.mxu0 %v638
      %v1975 = vpop.f32.mrf.mxu0
      %v1976 = vadd.f32 %v1831, %v1975
      %v1977 = vpop.f32.mrf.mxu0
      %1978 = vmatprep.mubr.f32.mxu0 %v692
      %1979 = vmatmul.mubr.f32.gmra.mxu0 %v600
      %v1980 = vpop.f32.mrf.mxu0
      %v1981 = vadd.f32 %v1836, %v1980
      %v1982 = vpop.f32.mrf.mxu0
      %1983 = vmatprep.mubr.f32.mxu0 %v695
      %1984 = vmatmul.mubr.f32.gmra.mxu0 %v639
      %v1985 = vpop.f32.mrf.mxu0
      %v1986 = vadd.f32 %v1841, %v1985
      %v1987 = vpop.f32.mrf.mxu0
      %1988 = vmatprep.mubr.f32.mxu0 %v697
      %1989 = vmatmul.mubr.f32.gmra.mxu0 %v603
      %v1990 = vpop.f32.mrf.mxu0
      %v1991 = vadd.f32 %v1846, %v1990
      %v1992 = vpop.f32.mrf.mxu0
      %1993 = vmatprep.mubr.f32.mxu0 %v700
      %1994 = vmatmul.mubr.f32.gmra.mxu0 %v640
      %v1995 = vpop.f32.mrf.mxu0
      %v1996 = vadd.f32 %v1851, %v1995
      %v1997 = vpop.f32.mrf.mxu0
      %1998 = vmatprep.mubr.f32.mxu0 %v702
      %1999 = vmatmul.mubr.f32.gmra.mxu0 %v606
      %v2000 = vpop.f32.mrf.mxu0
      %v2001 = vadd.f32 %v1856, %v2000
      %v2002 = vpop.f32.mrf.mxu0
      %2003 = vmatprep.mubr.f32.mxu0 %v881
      %2004 = vmatmul.mubr.f32.gmra.mxu0 %v641
      %v2005 = vpop.f32.mrf.mxu0
      %v2006 = vadd.f32 %v1861, %v2005
      %v2007 = vpop.f32.mrf.mxu0
      %2008 = vmatprep.mubr.f32.mxu0 %v883
      %2009 = vmatmul.mubr.f32.gmra.mxu0 %v609
      %v2010 = vpop.f32.mrf.mxu0
      %v2011 = vadd.f32 %v1866, %v2010
      %v2012 = vpop.f32.mrf.mxu0
      %2013 = vmatprep.mubr.f32.mxu0 %v667
      %2014 = vmatmul.mubr.f32.gmra.mxu0 0.0
      %v2015 = vpop.f32.mrf.mxu0
      %v2016 = vadd.f32 %v1871, %v2015
      %v2017 = vpop.f32.mrf.mxu0
      %2018 = vmatprep.mubr.f32.mxu0 %v667
      %2019 = vmatmul.mubr.f32.gmra.mxu0 0.0
      %v2020 = vpop.f32.mrf.mxu0
      %v2021 = vadd.f32 %v1876, %v2020
      %v2022 = vpop.f32.mrf.mxu0
      %2023 = vdwg.mxu0
      %2024 = vmatprep.subr.mxu0 0.0
      %2025 = vmatpush1.msra.mxu0 %v1114
      %2026 = vmatprep.subr.mxu0 0.0
      %2027 = vmatpush1.msra.mxu0 %v1113
      %2028 = vmatprep.subr.mxu0 0.0
      %2029 = vmatpush1.msra.mxu0 %v1112
      %2030 = vmatprep.subr.mxu0 0.0
      %2031 = vmatpush1.msra.mxu0 %v1111
      %2032 = vmatprep.subr.mxu0 0.0
      %2033 = vmatpush1.msra.mxu0 %v1110
      %2034 = vmatprep.subr.mxu0 0.0
      %2035 = vmatpush1.msra.mxu0 %v1109
      %2036 = vmatprep.subr.mxu0 0.0
      %2037 = vmatpush1.msra.mxu0 %v1108
      %2038 = vmatprep.subr.mxu0 0.0
      %2039 = vmatpush1.msra.mxu0 %v1107
      %2040 = vmatprep.subr.mxu0 0.0
      %2041 = vmatpush1.msra.mxu0 %v1106
      %2042 = vmatprep.subr.mxu0 0.0
      %2043 = vmatpush1.msra.mxu0 %v1105
      %2044 = vmatprep.subr.mxu0 0.0
      %2045 = vmatpush1.msra.mxu0 %v1104
      %2046 = vmatprep.subr.mxu0 0.0
      %2047 = vmatpush1.msra.mxu0 %v1103
      %2048 = vmatprep.subr.mxu0 0.0
      %2049 = vmatpush1.msra.mxu0 %v1102
      %2050 = vmatprep.subr.mxu0 0.0
      %2051 = vmatpush1.msra.mxu0 %v1101
      %2052 = vmatprep.subr.mxu0 0.0
      %2053 = vmatpush1.msra.mxu0 %v1100
      %2054 = vmatprep.subr.mxu0 0.0
      %2055 = vmatpush1.msra.mxu0 %v1099
      %2056 = vmatprep.subr.mxu0 0.0
      %2057 = vmatpush2.msra.mxu0 %v1130
      %2058 = vmatprep.subr.mxu0 0.0
      %2059 = vmatpush2.msra.mxu0 %v1129
      %2060 = vmatprep.subr.mxu0 0.0
      %2061 = vmatpush2.msra.mxu0 %v1128
      %2062 = vmatprep.subr.mxu0 0.0
      %2063 = vmatpush2.msra.mxu0 %v1127
      %2064 = vmatprep.subr.mxu0 0.0
      %2065 = vmatpush2.msra.mxu0 %v1126
      %2066 = vmatprep.subr.mxu0 0.0
      %2067 = vmatpush2.msra.mxu0 %v1125
      %2068 = vmatprep.subr.mxu0 0.0
      %2069 = vmatpush2.msra.mxu0 %v1124
      %2070 = vmatprep.subr.mxu0 0.0
      %2071 = vmatpush2.msra.mxu0 %v1123
      %2072 = vmatprep.subr.mxu0 0.0
      %2073 = vmatpush2.msra.mxu0 %v1122
      %2074 = vmatprep.subr.mxu0 0.0
      %2075 = vmatpush2.msra.mxu0 %v1121
      %2076 = vmatprep.subr.mxu0 0.0
      %2077 = vmatpush2.msra.mxu0 %v1120
      %2078 = vmatprep.subr.mxu0 0.0
      %2079 = vmatpush2.msra.mxu0 %v1119
      %2080 = vmatprep.subr.mxu0 0.0
      %2081 = vmatpush2.msra.mxu0 %v1118
      %2082 = vmatprep.subr.mxu0 0.0
      %2083 = vmatpush2.msra.mxu0 %v1117
      %2084 = vmatprep.subr.mxu0 0.0
      %2085 = vmatpush2.msra.mxu0 %v1116
      %2086 = vmatprep.subr.mxu0 0.0
      %2087 = vmatpush2.msra.mxu0 %v1115
      %2088 = vmatprep.mubr.f32.mxu0 %v781
      %2089 = vmatmul.mubr.f32.gmra.mxu0 %v728
      %v2090 = vpop.f32.mrf.mxu0
      %v2091 = vadd.f32 %v1946, %v2090
      %v2092 = vpop.f32.mrf.mxu0
      %2093 = vmatprep.mubr.f32.mxu0 %v783
      %2094 = vmatmul.mubr.f32.gmra.mxu0 %v730
      %v2095 = vpop.f32.mrf.mxu0
      %v2096 = vadd.f32 %v1951, %v2095
      %v2097 = vpop.f32.mrf.mxu0
      %2098 = vmatprep.mubr.f32.mxu0 %v786
      %2099 = vmatmul.mubr.f32.gmra.mxu0 %v733
      %v2100 = vpop.f32.mrf.mxu0
      %v2101 = vadd.f32 %v1956, %v2100
      %v2102 = vpop.f32.mrf.mxu0
      %2103 = vmatprep.mubr.f32.mxu0 %v788
      %2104 = vmatmul.mubr.f32.gmra.mxu0 %v735
      %v2105 = vpop.f32.mrf.mxu0
      %v2106 = vadd.f32 %v1961, %v2105
      %v2107 = vpop.f32.mrf.mxu0
      %2108 = vmatprep.mubr.f32.mxu0 %v791
      %2109 = vmatmul.mubr.f32.gmra.mxu0 %v738
      %v2110 = vpop.f32.mrf.mxu0
      %v2111 = vadd.f32 %v1966, %v2110
      %v2112 = vpop.f32.mrf.mxu0
      %2113 = vmatprep.mubr.f32.mxu0 %v793
      %2114 = vmatmul.mubr.f32.gmra.mxu0 %v740
      %v2115 = vpop.f32.mrf.mxu0
      %v2116 = vadd.f32 %v1971, %v2115
      %v2117 = vpop.f32.mrf.mxu0
      %2118 = vmatprep.mubr.f32.mxu0 %v796
      %2119 = vmatmul.mubr.f32.gmra.mxu0 %v743
      %v2120 = vpop.f32.mrf.mxu0
      %v2121 = vadd.f32 %v1976, %v2120
      %v2122 = vpop.f32.mrf.mxu0
      %2123 = vmatprep.mubr.f32.mxu0 %v798
      %2124 = vmatmul.mubr.f32.gmra.mxu0 %v745
      %v2125 = vpop.f32.mrf.mxu0
      %v2126 = vadd.f32 %v1981, %v2125
      %v2127 = vpop.f32.mrf.mxu0
      %2128 = vmatprep.mubr.f32.mxu0 %v801
      %2129 = vmatmul.mubr.f32.gmra.mxu0 %v748
      %v2130 = vpop.f32.mrf.mxu0
      %v2131 = vadd.f32 %v1986, %v2130
      %v2132 = vpop.f32.mrf.mxu0
      %2133 = vmatprep.mubr.f32.mxu0 %v803
      %2134 = vmatmul.mubr.f32.gmra.mxu0 %v750
      %v2135 = vpop.f32.mrf.mxu0
      %v2136 = vadd.f32 %v1991, %v2135
      %v2137 = vpop.f32.mrf.mxu0
      %2138 = vmatprep.mubr.f32.mxu0 %v806
      %2139 = vmatmul.mubr.f32.gmra.mxu0 %v753
      %v2140 = vpop.f32.mrf.mxu0
      %v2141 = vadd.f32 %v1996, %v2140
      %v2142 = vpop.f32.mrf.mxu0
      %2143 = vmatprep.mubr.f32.mxu0 %v808
      %2144 = vmatmul.mubr.f32.gmra.mxu0 %v755
      %v2145 = vpop.f32.mrf.mxu0
      %v2146 = vadd.f32 %v2001, %v2145
      %v2147 = vpop.f32.mrf.mxu0
      %2148 = vmatprep.mubr.f32.mxu0 %v895
      %2149 = vmatmul.mubr.f32.gmra.mxu0 %v888
      %v2150 = vpop.f32.mrf.mxu0
      %v2151 = vadd.f32 %v2006, %v2150
      %v2152 = vpop.f32.mrf.mxu0
      %2153 = vmatprep.mubr.f32.mxu0 %v897
      %2154 = vmatmul.mubr.f32.gmra.mxu0 %v890
      %v2155 = vpop.f32.mrf.mxu0
      %v2156 = vadd.f32 %v2011, %v2155
      %v2157 = vpop.f32.mrf.mxu0
      %2158 = vmatprep.mubr.f32.mxu0 %v773
      %2159 = vmatmul.mubr.f32.gmra.mxu0 %v720
      %v2160 = vpop.f32.mrf.mxu0
      %v2161 = vadd.f32 %v2016, %v2160
      %v2162 = vpop.f32.mrf.mxu0
      %2163 = vmatprep.mubr.f32.mxu0 %v773
      %2164 = vmatmul.mubr.f32.gmra.mxu0 %v720
      %v2165 = vpop.f32.mrf.mxu0
      %v2166 = vadd.f32 %v2021, %v2165
      %v2167 = vpop.f32.mrf.mxu0
      %2168 = vdwg.mxu0
      %2169 = vmatprep.subr.mxu0 0.0
      %2170 = vmatpush1.msra.mxu0 %v1146
      %2171 = vmatprep.subr.mxu0 0.0
      %2172 = vmatpush1.msra.mxu0 %v1145
      %2173 = vmatprep.subr.mxu0 0.0
      %2174 = vmatpush1.msra.mxu0 %v1144
      %2175 = vmatprep.subr.mxu0 0.0
      %2176 = vmatpush1.msra.mxu0 %v1143
      %2177 = vmatprep.subr.mxu0 0.0
      %2178 = vmatpush1.msra.mxu0 %v1142
      %2179 = vmatprep.subr.mxu0 0.0
      %2180 = vmatpush1.msra.mxu0 %v1141
      %2181 = vmatprep.subr.mxu0 0.0
      %2182 = vmatpush1.msra.mxu0 %v1140
      %2183 = vmatprep.subr.mxu0 0.0
      %2184 = vmatpush1.msra.mxu0 %v1139
      %2185 = vmatprep.subr.mxu0 0.0
      %2186 = vmatpush1.msra.mxu0 %v1138
      %2187 = vmatprep.subr.mxu0 0.0
      %2188 = vmatpush1.msra.mxu0 %v1137
      %2189 = vmatprep.subr.mxu0 0.0
      %2190 = vmatpush1.msra.mxu0 %v1136
      %2191 = vmatprep.subr.mxu0 0.0
      %2192 = vmatpush1.msra.mxu0 %v1135
      %2193 = vmatprep.subr.mxu0 0.0
      %2194 = vmatpush1.msra.mxu0 %v1134
      %2195 = vmatprep.subr.mxu0 0.0
      %2196 = vmatpush1.msra.mxu0 %v1133
      %2197 = vmatprep.subr.mxu0 0.0
      %2198 = vmatpush1.msra.mxu0 %v1132
      %2199 = vmatprep.subr.mxu0 0.0
      %2200 = vmatpush1.msra.mxu0 %v1131
      %2201 = vmatprep.subr.mxu0 0.0
      %2202 = vmatpush2.msra.mxu0 0.0
      %2203 = vmatprep.subr.mxu0 0.0
      %2204 = vmatpush2.msra.mxu0 0.0
      %2205 = vmatprep.subr.mxu0 0.0
      %2206 = vmatpush2.msra.mxu0 0.0
      %2207 = vmatprep.subr.mxu0 0.0
      %2208 = vmatpush2.msra.mxu0 0.0
      %2209 = vmatprep.subr.mxu0 0.0
      %2210 = vmatpush2.msra.mxu0 0.0
      %2211 = vmatprep.subr.mxu0 0.0
      %2212 = vmatpush2.msra.mxu0 0.0
      %2213 = vmatprep.subr.mxu0 0.0
      %2214 = vmatpush2.msra.mxu0 0.0
      %2215 = vmatprep.subr.mxu0 0.0
      %2216 = vmatpush2.msra.mxu0 0.0
      %2217 = vmatprep.subr.mxu0 0.0
      %2218 = vmatpush2.msra.mxu0 0.0
      %2219 = vmatprep.subr.mxu0 0.0
      %2220 = vmatpush2.msra.mxu0 0.0
      %2221 = vmatprep.subr.mxu0 0.0
      %2222 = vmatpush2.msra.mxu0 0.0
      %2223 = vmatprep.subr.mxu0 0.0
      %2224 = vmatpush2.msra.mxu0 0.0
      %2225 = vmatprep.subr.mxu0 0.0
      %2226 = vmatpush2.msra.mxu0 0.0
      %2227 = vmatprep.subr.mxu0 0.0
      %2228 = vmatpush2.msra.mxu0 0.0
      %2229 = vmatprep.subr.mxu0 0.0
      %2230 = vmatpush2.msra.mxu0 0.0
      %2231 = vmatprep.subr.mxu0 0.0
      %2232 = vmatpush2.msra.mxu0 0.0
      %2233 = vmatprep.mubr.f32.mxu0 0.0
      %2234 = vmatmul.mubr.f32.gmra.mxu0 %v834
      %v2235 = vpop.f32.mrf.mxu0
      %v2236 = vadd.f32 %v2091, %v2235
      %v2237 = vpop.f32.mrf.mxu0
      %2238 = vmatprep.mubr.f32.mxu0 0.0
      %2239 = vmatmul.mubr.f32.gmra.mxu0 %v836
      %v2240 = vpop.f32.mrf.mxu0
      %v2241 = vadd.f32 %v2096, %v2240
      %v2242 = vpop.f32.mrf.mxu0
      %2243 = vmatprep.mubr.f32.mxu0 0.0
      %2244 = vmatmul.mubr.f32.gmra.mxu0 %v839
      %v2245 = vpop.f32.mrf.mxu0
      %v2246 = vadd.f32 %v2101, %v2245
      %v2247 = vpop.f32.mrf.mxu0
      %2248 = vmatprep.mubr.f32.mxu0 0.0
      %2249 = vmatmul.mubr.f32.gmra.mxu0 %v841
      %v2250 = vpop.f32.mrf.mxu0
      %v2251 = vadd.f32 %v2106, %v2250
      %v2252 = vpop.f32.mrf.mxu0
      %2253 = vmatprep.mubr.f32.mxu0 0.0
      %2254 = vmatmul.mubr.f32.gmra.mxu0 %v844
      %v2255 = vpop.f32.mrf.mxu0
      %v2256 = vadd.f32 %v2111, %v2255
      %v2257 = vpop.f32.mrf.mxu0
      %2258 = vmatprep.mubr.f32.mxu0 0.0
      %2259 = vmatmul.mubr.f32.gmra.mxu0 %v846
      %v2260 = vpop.f32.mrf.mxu0
      %v2261 = vadd.f32 %v2116, %v2260
      %v2262 = vpop.f32.mrf.mxu0
      %2263 = vmatprep.mubr.f32.mxu0 0.0
      %2264 = vmatmul.mubr.f32.gmra.mxu0 %v849
      %v2265 = vpop.f32.mrf.mxu0
      %v2266 = vadd.f32 %v2121, %v2265
      %v2267 = vpop.f32.mrf.mxu0
      %2268 = vmatprep.mubr.f32.mxu0 0.0
      %2269 = vmatmul.mubr.f32.gmra.mxu0 %v851
      %v2270 = vpop.f32.mrf.mxu0
      %v2271 = vadd.f32 %v2126, %v2270
      %v2272 = vpop.f32.mrf.mxu0
      %2273 = vmatprep.mubr.f32.mxu0 0.0
      %2274 = vmatmul.mubr.f32.gmra.mxu0 %v854
      %v2275 = vpop.f32.mrf.mxu0
      %v2276 = vadd.f32 %v2131, %v2275
      %v2277 = vpop.f32.mrf.mxu0
      %2278 = vmatprep.mubr.f32.mxu0 0.0
      %2279 = vmatmul.mubr.f32.gmra.mxu0 %v856
      %v2280 = vpop.f32.mrf.mxu0
      %v2281 = vadd.f32 %v2136, %v2280
      %v2282 = vpop.f32.mrf.mxu0
      %2283 = vmatprep.mubr.f32.mxu0 0.0
      %2284 = vmatmul.mubr.f32.gmra.mxu0 %v859
      %v2285 = vpop.f32.mrf.mxu0
      %v2286 = vadd.f32 %v2141, %v2285
      %v2287 = vpop.f32.mrf.mxu0
      %2288 = vmatprep.mubr.f32.mxu0 0.0
      %2289 = vmatmul.mubr.f32.gmra.mxu0 %v861
      %v2290 = vpop.f32.mrf.mxu0
      %v2291 = vadd.f32 %v2146, %v2290
      %v2292 = vpop.f32.mrf.mxu0
      %2293 = vmatprep.mubr.f32.mxu0 0.0
      %2294 = vmatmul.mubr.f32.gmra.mxu0 %v902
      %v2295 = vpop.f32.mrf.mxu0
      %v2296 = vadd.f32 %v2151, %v2295
      %v2297 = vpop.f32.mrf.mxu0
      %2298 = vmatprep.mubr.f32.mxu0 0.0
      %2299 = vmatmul.mubr.f32.gmra.mxu0 %v904
      %v2300 = vpop.f32.mrf.mxu0
      %v2301 = vadd.f32 %v2156, %v2300
      %v2302 = vpop.f32.mrf.mxu0
      %2303 = vmatprep.mubr.f32.mxu0 0.0
      %2304 = vmatmul.mubr.f32.gmra.mxu0 %v826
      %v2305 = vpop.f32.mrf.mxu0
      %v2306 = vadd.f32 %v2161, %v2305
      %v2307 = vpop.f32.mrf.mxu0
      %2308 = vmatprep.mubr.f32.mxu0 0.0
      %2309 = vmatmul.mubr.f32.gmra.mxu0 %v826
      %v2310 = vpop.f32.mrf.mxu0
      %v2311 = vadd.f32 %v2166, %v2310
      %v2312 = vpop.f32.mrf.mxu0
      %2313 = vdwg.mxu0
      %v2314 = vxor.u32 %v2236, 2147483648
      %v2315 = vxor.u32 %v2241, 2147483648
      %v2316 = vxor.u32 %v2246, 2147483648
      %v2317 = vxor.u32 %v2251, 2147483648
      %v2318 = vxor.u32 %v2256, 2147483648
      %v2319 = vxor.u32 %v2261, 2147483648
      %v2320 = vxor.u32 %v2266, 2147483648
      %v2321 = vxor.u32 %v2271, 2147483648
      %v2322 = vxor.u32 %v2276, 2147483648
      %v2323 = vxor.u32 %v2281, 2147483648
      %v2324 = vxor.u32 %v2286, 2147483648
      %v2325 = vxor.u32 %v2291, 2147483648
      %v2326 = vxor.u32 %v2296, 2147483648
      %v2327 = vxor.u32 %v2301, 2147483648
      %v2328 = vxor.u32 %v2306, 2147483648
      %v2329 = vxor.u32 %v2311, 2147483648
      %v2330 = vmul.f32 %v2314, 1.442695
      %v2331 = vpow.pop %v2330
      %v2332 = vmul.f32 %v2315, 1.442695
      %v2333 = vpow.pop %v2332
      %v2334 = vmul.f32 %v2316, 1.442695
      %v2335 = vpow.pop %v2334
      %v2336 = vmul.f32 %v2317, 1.442695
      %v2337 = vpow.pop %v2336
      %v2338 = vmul.f32 %v2318, 1.442695
      %v2339 = vpow.pop %v2338
      %v2340 = vmul.f32 %v2319, 1.442695
      %v2341 = vpow.pop %v2340
      %v2342 = vmul.f32 %v2320, 1.442695
      %v2343 = vpow.pop %v2342
      %v2344 = vmul.f32 %v2321, 1.442695
      %v2345 = vpow.pop %v2344
      %v2346 = vmul.f32 %v2322, 1.442695
      %v2347 = vpow.pop %v2346
      %v2348 = vmul.f32 %v2323, 1.442695
      %v2349 = vpow.pop %v2348
      %v2350 = vmul.f32 %v2324, 1.442695
      %v2351 = vpow.pop %v2350
      %v2352 = vmul.f32 %v2325, 1.442695
      %v2353 = vpow.pop %v2352
      %v2354 = vmul.f32 %v2326, 1.442695
      %v2355 = vpow.pop %v2354
      %v2356 = vmul.f32 %v2327, 1.442695
      %v2357 = vpow.pop %v2356
      %v2358 = vmul.f32 %v2328, 1.442695
      %v2359 = vpow.pop %v2358
      %v2360 = vmul.f32 %v2329, 1.442695
      %v2361 = vpow.pop %v2360
      %v2362 = vadd.f32 %v2331, 1.0
      %v2363 = vadd.f32 %v2333, 1.0
      %v2364 = vadd.f32 %v2335, 1.0
      %v2365 = vadd.f32 %v2337, 1.0
      %v2366 = vadd.f32 %v2339, 1.0
      %v2367 = vadd.f32 %v2341, 1.0
      %v2368 = vadd.f32 %v2343, 1.0
      %v2369 = vadd.f32 %v2345, 1.0
      %v2370 = vadd.f32 %v2347, 1.0
      %v2371 = vadd.f32 %v2349, 1.0
      %v2372 = vadd.f32 %v2351, 1.0
      %v2373 = vadd.f32 %v2353, 1.0
      %v2374 = vadd.f32 %v2355, 1.0
      %v2375 = vadd.f32 %v2357, 1.0
      %v2376 = vadd.f32 %v2359, 1.0
      %v2377 = vadd.f32 %v2361, 1.0
      %v2378 = vrcp.pop %v2362
      %v2379 = vmul.f32 1.0, %v2378
      %v2380 = vrcp.pop %v2363
      %v2381 = vmul.f32 1.0, %v2380
      %v2382 = vrcp.pop %v2364
      %v2383 = vmul.f32 1.0, %v2382
      %v2384 = vrcp.pop %v2365
      %v2385 = vmul.f32 1.0, %v2384
      %v2386 = vrcp.pop %v2366
      %v2387 = vmul.f32 1.0, %v2386
      %v2388 = vrcp.pop %v2367
      %v2389 = vmul.f32 1.0, %v2388
      %v2390 = vrcp.pop %v2368
      %v2391 = vmul.f32 1.0, %v2390
      %v2392 = vrcp.pop %v2369
      %v2393 = vmul.f32 1.0, %v2392
      %v2394 = vrcp.pop %v2370
      %v2395 = vmul.f32 1.0, %v2394
      %v2396 = vrcp.pop %v2371
      %v2397 = vmul.f32 1.0, %v2396
      %v2398 = vrcp.pop %v2372
      %v2399 = vmul.f32 1.0, %v2398
      %v2400 = vrcp.pop %v2373
      %v2401 = vmul.f32 1.0, %v2400
      %v2402 = vrcp.pop %v2374
      %v2403 = vmul.f32 1.0, %v2402
      %v2404 = vrcp.pop %v2375
      %v2405 = vmul.f32 1.0, %v2404
      %v2406 = vrcp.pop %v2376
      %v2407 = vmul.f32 1.0, %v2406
      %v2408 = vrcp.pop %v2377
      %v2409 = vmul.f32 1.0, %v2408
      %v2410 = vmul.f32 %v2236, %v2379
      %v2411 = vmul.f32 %v2241, %v2381
      %v2412 = vmul.f32 %v2246, %v2383
      %v2413 = vmul.f32 %v2251, %v2385
      %v2414 = vmul.f32 %v2256, %v2387
      %v2415 = vmul.f32 %v2261, %v2389
      %v2416 = vmul.f32 %v2266, %v2391
      %v2417 = vmul.f32 %v2271, %v2393
      %v2418 = vmul.f32 %v2276, %v2395
      %v2419 = vmul.f32 %v2281, %v2397
      %v2420 = vmul.f32 %v2286, %v2399
      %v2421 = vmul.f32 %v2291, %v2401
      %v2422 = vmul.f32 %v2296, %v2403
      %v2423 = vmul.f32 %v2301, %v2405
      %v2424 = vmul.f32 %v2306, %v2407
      %v2425 = vmul.f32 %v2311, %v2409
      %2426 = vst [vmem:[%s224] sm:$0xff] %v2410
      %2427 = vst [vmem:[%s224 + $0x8] sm:$0xff] %v2411
      %2428 = vst [vmem:[%s224 + $0x10] sm:$0xff] %v2412
      %2429 = vst [vmem:[%s224 + $0x18] sm:$0xff] %v2413
      %2430 = vst [vmem:[%s224 + $0x20] sm:$0xff] %v2414
      %2431 = vst [vmem:[%s224 + $0x28] sm:$0xff] %v2415
      %2432 = vst [vmem:[%s224 + $0x30] sm:$0xff] %v2416
      %2433 = vst [vmem:[%s224 + $0x38] sm:$0xff] %v2417
      %2434 = vst [vmem:[%s224 + $0x40] sm:$0xff] %v2418
      %2435 = vst [vmem:[%s224 + $0x48] sm:$0xff] %v2419
      %2436 = vst [vmem:[%s224 + $0x50] sm:$0xff] %v2420
      %2437 = vst [vmem:[%s224 + $0x58] sm:$0xff] %v2421
      %2438 = vst [vmem:[%s224 + $0x60] sm:$0xff] %v2422
      %2439 = vst [vmem:[%s224 + $0x68] sm:$0xff] %v2423
      %2440 = vst [vmem:[%s224 + $0x70] sm:$0xff] %v2424
      %2441 = vst [vmem:[%s224 + $0x78] sm:$0xff] %v2425
      %p2442 = scmp.lt.s32.totalorder %s16, 1
      %s2443 = scalar_select %p2442, %s16, 1
      %s2444 = smul.addr %s2443, 16
      %s2445 = smul.addr %s2444, 8
      %s2446 = scalar_lea.vmem %s5, %s2445
      // Predicated region
      $region41: #{sebastian_up2_forward.1} parent=39 // pred_check
        %p2447 = pneg %p144
      $region42: #{sebastian_up2_forward.1} parent=39 // pred_check_branch
        %2449 = sbr.rel (%p2447) target = $region44
      $region43: #{sebastian_up2_forward.1} parent=39 // pred_region
        _
      $region44: #{sebastian_up2_forward.1} parent=39 // pred_fallthru
        _
    $region40: #{sebastian_up2_forward.1} parent=5 // pred_fallthru
      _
    %p2450 = scmp.le.s32.totalorder 2, %s11
    // Predicated region
    $region45: #{sebastian_up2_forward.1} parent=5 // pred_check
      %p2451 = pneg %p2450
    $region46: #{sebastian_up2_forward.1} parent=5 // pred_check_branch
      %2453 = sbr.rel (%p2451) target = $region48
    $region47: #{sebastian_up2_forward.1} parent=5 // pred_region
      %s2454 = ssub.s32 %s11, 2
      // Predicated region
      $region49: #{sebastian_up2_forward.1} parent=47 // pred_check
        %p2455 = pneg %p150
      $region50: #{sebastian_up2_forward.1} parent=47 // pred_check_branch
        %2457 = sbr.rel (%p2455) target = $region52
      $region51: #{sebastian_up2_forward.1} parent=47 // pred_region
        %p2458 = scmp.lt.s32.totalorder %s17, 1
        %s2459 = scalar_select %p2458, %s17, 1
        %s2460 = smul.addr %s2459, 16
        %s2461 = smul.addr %s2460, 8
        %s2462 = scalar_lea.vmem %s5, %s2461
      $region52: #{sebastian_up2_forward.1} parent=47 // pred_fallthru
        _
    $region48: #{sebastian_up2_forward.1} parent=5 // pred_fallthru
      _
  $region6: #{sebastian_up2_forward.1} parent=0 // loop_footer
    %s15 = sadd.s32 1, %s11
  $region7: #{sebastian_up2_forward.1} parent=0 // loop_footer_branch
    %10 = sbr.rel target = $region3
  $region8: #{sebastian_up2_forward.1} parent=0 // loop_exit
    _

</llo_original>
